<compile_context>
chip_gen: v6e
topology: v6e:2x2x1
jax: 0.10.0
libtpu: 0.0.40
codegen_flags: <defaults>
</compile_context>

<pallas_src>
import functools
import math

import jax
import jax.numpy as jnp
from jax import lax
from jax.experimental import pallas as pl
from jax.experimental.pallas import tpu as pltpu


_LANE = 128      # channel (lane) padding quantum
_SUBLANE = 8     # W (sublane) padding quantum


def _round_up(x, m):
    return (x + m - 1) // m * m


def _pick_row_tile(total, target):
    t = max(1, min(total, target))
    while total % t:
        t -= 1
    return t


def _bottleneck_kernel(x_ref, w1_ref, s1_ref, b1_ref, a1_ref,
                       wdw_ref, s2_ref, b2_ref, a2_ref,
                       w3_ref, s3_ref, b3_ref,
                       o_ref, hp_ref, *,
                       stride, connect, th_out, w_in, w_out, zero_bottom):
    """One (batch, output-row-strip) step of the inverted-residual block."""
    sidx = pl.program_id(1)
    n_in_rows = (th_out - 1) * stride + 3      # padded-input rows needed (incl. halo)
    acc_rows = (th_out - 1) * stride + 1       # full-resolution depthwise rows
    row0 = sidx * (th_out * stride)            # first padded-input row of this strip

    cpin = x_ref.shape[-1]
    cph = hp_ref.shape[-1]
    cpo = w3_ref.shape[-1]
    wp = hp_ref.shape[1]

    # ---- stage 1: 1x1 expansion conv (MXU, bf16 x bf16 -> f32 acc) + BN + PReLU ---
    xs = x_ref[:, pl.ds(row0, n_in_rows), :, :]             # (1, rows, W, Cpin) bf16
    h = jnp.dot(xs.reshape(n_in_rows * w_in, cpin), w1_ref[...],
                preferred_element_type=jnp.float32)          # (rows*W, Cph) f32
    h = h * s1_ref[...] + b1_ref[...]
    h = jnp.where(h > 0, h, a1_ref[...] * h)                 # per-channel PReLU
    h = h.reshape(n_in_rows, w_in, cph)

    # ---- stage 2: 3x3 depthwise conv via sublane-aligned VMEM scratch -------------
    # Zero the padding-ring columns every step (so each core's scratch is valid under
    # megacore splitting), then write the strip into the interior columns.
    hp_ref[:, 0:1, :] = jnp.zeros((n_in_rows, 1, cph), jnp.float32)
    hp_ref[:, w_in + 1:, :] = jnp.zeros((n_in_rows, wp - w_in - 1, cph), jnp.float32)
    hp_ref[:, 1:1 + w_in, :] = h

    # Image-boundary halo rows must be true zero padding (stage 1 computed garbage on
    # the wrapper's zero halo rows -> overwrite with zeros).
    @pl.when(sidx == 0)
    def _():
        hp_ref[0:1, 1:1 + w_in, :] = jnp.zeros((1, w_in, cph), jnp.float32)

    if zero_bottom:
        @pl.when(sidx == pl.num_programs(1) - 1)
        def _():
            hp_ref[n_in_rows - 1:n_in_rows, 1:1 + w_in, :] = (
                jnp.zeros((1, w_in, cph), jnp.float32))

    # 9 unit-stride shifted windows; decimate once at the end for stride > 1.
    acc = jnp.zeros((acc_rows, w_in, cph), jnp.float32)
    for kh in range(3):
        for kw in range(3):
            t = kh * 3 + kw
            tap = wdw_ref[t:t + 1, :]                        # (1, Cph)
            acc = acc + hp_ref[kh:kh + acc_rows, kw:kw + w_in, :] * tap
    if stride > 1:
        acc = acc[::stride, ::stride, :]
    acc = acc[:th_out, :w_out, :]
    acc = acc * s2_ref[...] + b2_ref[...]
    acc = jnp.where(acc > 0, acc, a2_ref[...] * acc)

    # ---- stage 3: 1x1 projection conv (MXU) + BN (+ residual) ---------------------
    y = jnp.dot(acc.reshape(th_out * w_out, cph).astype(jnp.bfloat16),
                w3_ref[...], preferred_element_type=jnp.float32)
    y = y * s3_ref[...] + b3_ref[...]
    y = y.reshape(th_out, w_out, cpo)
    if connect:                                              # stride==1 and Cin==Cout
        y = y + xs[0, 1:1 + th_out, :, :].astype(jnp.float32)
    o_ref[...] = y.reshape(1, th_out, w_out, cpo).astype(o_ref.dtype)


def bottleneck_forward_nhwc(x_nhwc, pk, *, stride, connect, row_tile=8):
    """NHWC forward.  pk: kernel-layout params from init_bottleneck_params."""
    B, H, W, Cin = x_nhwc.shape
    Cpin, Cph = pk["w1"].shape
    Cpo = pk["w3"].shape[1]
    Cout = pk["cout"]

    Hout = (H - 1) // stride + 1
    Wout = (W - 1) // stride + 1
    th_out = _pick_row_tile(Hout, row_tile)
    n_strips = Hout // th_out
    n_in_rows = (th_out - 1) * stride + 3
    wp = _round_up(W + 2, _SUBLANE)
    zero_bottom = (Hout - 1) * stride == H - 1   # bottom halo row is true zero pad

    # Lane-pad channels, add one zero halo row top & bottom, cast to bf16 for the MXU.
    xk = jnp.pad(x_nhwc, ((0, 0), (1, 1), (0, 0), (0, Cpin - Cin))).astype(jnp.bfloat16)

    kernel = functools.partial(
        _bottleneck_kernel, stride=stride, connect=connect, th_out=th_out,
        w_in=W, w_out=Wout, zero_bottom=zero_bottom)

    def _const(b, s):       # resident weight / scale / bias blocks
        return (0, 0)

    in_specs = [
        # Halo-padded image stays resident per batch element; row strips (with
        # recomputed halo rows) are sliced out of it inside the kernel.
        pl.BlockSpec((1, H + 2, W, Cpin), lambda b, s: (b, 0, 0, 0)),
        pl.BlockSpec(pk["w1"].shape, _const),
        pl.BlockSpec(pk["s1"].shape, _const),
        pl.BlockSpec(pk["b1"].shape, _const),
        pl.BlockSpec(pk["a1"].shape, _const),
        pl.BlockSpec(pk["wdw"].shape, _const),
        pl.BlockSpec(pk["s2"].shape, _const),
        pl.BlockSpec(pk["b2"].shape, _const),
        pl.BlockSpec(pk["a2"].shape, _const),
        pl.BlockSpec(pk["w3"].shape, _const),
        pl.BlockSpec(pk["s3"].shape, _const),
        pl.BlockSpec(pk["b3"].shape, _const),
    ]
    out_spec = pl.BlockSpec((1, th_out, Wout, Cpo), lambda b, s: (b, s, 0, 0))

    y = pl.pallas_call(
        kernel,
        out_shape=jax.ShapeDtypeStruct((B, Hout, Wout, Cpo), jnp.float32),
        grid=(B, n_strips),
        in_specs=in_specs,
        out_specs=out_spec,
        scratch_shapes=[pltpu.VMEM((n_in_rows, wp, Cph), jnp.float32)],
        compiler_params=pltpu.CompilerParams(
            dimension_semantics=("parallel", "parallel"),
            vmem_limit_bytes=64 * 1024 * 1024),
    )(xk, pk["w1"], pk["s1"], pk["b1"], pk["a1"],
      pk["wdw"], pk["s2"], pk["b2"], pk["a2"],
      pk["w3"], pk["s3"], pk["b3"])
    return y[..., :Cout]


def bottleneck_forward(x_nchw, pk, *, stride, connect, row_tile=8):
    # TODO(synk): when chaining BottleNecks, keep activations NHWC between blocks and
    # call bottleneck_forward_nhwc directly (drops two full-tensor relayouts / block).
    x = jnp.transpose(x_nchw, (0, 2, 3, 1))                  # NCHW -> NHWC
    y = bottleneck_forward_nhwc(x, pk, stride=stride, connect=connect,
                                row_tile=row_tile)
    return jnp.transpose(y, (0, 3, 1, 2))                    # NHWC -> NCHW


def init_bottleneck_params(key, inp, oup, stride, expansion):
    """Deterministic synthetic parameters. Returns (torch-layout, kernel-layout)."""
    hid = inp * expansion
    ks = jax.random.split(key, 16)
    eps = 1e-5

    def bn_fold(kg, kb, km, kv, c):
        gamma = 1.0 + 0.1 * jax.random.normal(kg, (c,), jnp.float32)
        beta = 0.1 * jax.random.normal(kb, (c,), jnp.float32)
        mean = 0.1 * jax.random.normal(km, (c,), jnp.float32)
        var = 0.5 + jnp.abs(jax.random.normal(kv, (c,), jnp.float32))
        scale = gamma * lax.rsqrt(var + eps)
        bias = beta - mean * scale
        return scale, bias

    # PyTorch-shaped conv weights (bias=False everywhere, as in the module).
    w1_t = jax.random.normal(ks[0], (hid, inp, 1, 1), jnp.float32) / math.sqrt(inp)
    wdw_t = jax.random.normal(ks[1], (hid, 1, 3, 3), jnp.float32) / 3.0
    w3_t = jax.random.normal(ks[2], (oup, hid, 1, 1), jnp.float32) / math.sqrt(hid)

    s1, b1 = bn_fold(ks[3], ks[4], ks[5], ks[6], hid)
    s2, b2 = bn_fold(ks[7], ks[8], ks[9], ks[10], hid)
    s3, b3 = bn_fold(ks[11], ks[12], ks[13], ks[14], oup)
    a1 = jnp.full((hid,), 0.25, jnp.float32)                 # PReLU default init
    a2 = jnp.full((hid,), 0.25, jnp.float32)

    pt = dict(w1=w1_t, wdw=wdw_t, w3=w3_t,
              s1=s1, b1=b1, a1=a1, s2=s2, b2=b2, a2=a2, s3=s3, b3=b3)

    # Kernel layout: lane-padded channels (padding flows through as exact zeros),
    # bf16 matmul weights, (1, C) rows for scale / bias / alpha.
    cpin = _round_up(inp, _LANE)
    cph = _round_up(hid, _LANE)
    cpo = _round_up(oup, _LANE)

    def pad_mat(m, r, c):
        return jnp.zeros((r, c), jnp.float32).at[:m.shape[0], :m.shape[1]].set(m)

    def pad_vec(v, c):
        return jnp.zeros((1, c), jnp.float32).at[0, :v.shape[0]].set(v)

    w1_k = pad_mat(jnp.transpose(w1_t[:, :, 0, 0], (1, 0)), cpin, cph)      # (Cpin, Cph)
    wdw_k = pad_mat(jnp.transpose(wdw_t[:, 0, :, :].reshape(hid, 9), (1, 0)), 9, cph)
    w3_k = pad_mat(jnp.transpose(w3_t[:, :, 0, 0], (1, 0)), cph, cpo)       # (Cph, Cpo)

    pk = dict(
        w1=w1_k.astype(jnp.bfloat16),
        wdw=wdw_k,                                           # f32 (VPU elementwise)
        w3=w3_k.astype(jnp.bfloat16),
        s1=pad_vec(s1, cph), b1=pad_vec(b1, cph), a1=pad_vec(a1, cph),
        s2=pad_vec(s2, cph), b2=pad_vec(b2, cph), a2=pad_vec(a2, cph),
        s3=pad_vec(s3, cpo), b3=pad_vec(b3, cpo),
        cin=inp, cout=oup)
    return pt, pk


def bottleneck_ref(x, pt, *, stride, connect):
    """Pure-JAX reference (NCHW, mirrors the PyTorch forward in eval mode)."""
    def bcast(v):
        return v[None, :, None, None]
    prec = lax.Precision.HIGHEST
    h = lax.conv_general_dilated(x, pt["w1"], (1, 1), "VALID",
                                 dimension_numbers=("NCHW", "OIHW", "NCHW"),
                                 precision=prec)
    h = h * bcast(pt["s1"]) + bcast(pt["b1"])
    h = jnp.where(h > 0, h, bcast(pt["a1"]) * h)
    h = lax.conv_general_dilated(h, pt["wdw"], (stride, stride), ((1, 1), (1, 1)),
                                 dimension_numbers=("NCHW", "OIHW", "NCHW"),
                                 feature_group_count=h.shape[1],
                                 precision=prec)
    h = h * bcast(pt["s2"]) + bcast(pt["b2"])
    h = jnp.where(h > 0, h, bcast(pt["a2"]) * h)
    h = lax.conv_general_dilated(h, pt["w3"], (1, 1), "VALID",
                                 dimension_numbers=("NCHW", "OIHW", "NCHW"),
                                 precision=prec)
    h = h * bcast(pt["s3"]) + bcast(pt["b3"])
    return x + h if connect else h


if __name__ == "__main__":
    key = jax.random.PRNGKey(0)
    kx, kp1, kp2, kp3 = jax.random.split(key, 4)

    def rel_err(a, b):
        a = a.astype(jnp.float32)
        b = b.astype(jnp.float32)
        return float(jnp.linalg.norm(a - b) / (jnp.linalg.norm(b) + 1e-12))

    # Case 1: residual branch (stride=1, inp == oup -> connect=True), 2 row strips.
    inp, oup, stride, expansion = 4, 4, 1, 2
    x = jax.random.normal(kx, (2, inp, 16, 16), jnp.float32)
    pt, pk = init_bottleneck_params(kp1, inp, oup, stride, expansion)
    connect = (stride == 1 and inp == oup)
    y = jax.block_until_ready(bottleneck_forward(x, pk, stride=stride, connect=connect))
    y_ref = bottleneck_ref(x, pt, stride=stride, connect=connect)
    assert y.shape == y_ref.shape == (2, oup, 16, 16)
    assert rel_err(y, y_ref) < 2e-2, rel_err(y, y_ref)

    # Case 2: no residual (inp != oup), 4 row strips (exercises interior strips).
    inp2, oup2 = 4, 8
    pt2, pk2 = init_bottleneck_params(kp2, inp2, oup2, 1, 2)
    y2 = jax.block_until_ready(
        bottleneck_forward(x, pk2, stride=1, connect=False, row_tile=4))
    y2_ref = bottleneck_ref(x, pt2, stride=1, connect=False)
    assert y2.shape == y2_ref.shape == (2, oup2, 16, 16)
    assert rel_err(y2, y2_ref) < 2e-2, rel_err(y2, y2_ref)

    # Case 3: stride 2 (decimated depthwise path), 2 row strips.
    inp3, oup3, stride3 = 4, 8, 2
    pt3, pk3 = init_bottleneck_params(kp3, inp3, oup3, stride3, 2)
    y3 = jax.block_until_ready(
        bottleneck_forward(x, pk3, stride=stride3, connect=False, row_tile=4))
    y3_ref = bottleneck_ref(x, pt3, stride=stride3, connect=False)
    assert y3.shape == y3_ref.shape == (2, oup3, 8, 8)
    assert rel_err(y3, y3_ref) < 2e-2, rel_err(y3, y3_ref)

    print("KERNEL_OK")
</pallas_src>

<mosaic_0001>
module attributes {stable_mosaic.version = 11 : i64} {
  func.func @_bottleneck_kernel(%arg0: i32, %arg1: i32, %arg2: memref<1x18x16x128xbf16, #tpu.memory_space<vmem>>, %arg3: memref<128x128xbf16, #tpu.memory_space<vmem>>, %arg4: memref<1x128xf32, #tpu.memory_space<vmem>>, %arg5: memref<1x128xf32, #tpu.memory_space<vmem>>, %arg6: memref<1x128xf32, #tpu.memory_space<vmem>>, %arg7: memref<9x128xf32, #tpu.memory_space<vmem>>, %arg8: memref<1x128xf32, #tpu.memory_space<vmem>>, %arg9: memref<1x128xf32, #tpu.memory_space<vmem>>, %arg10: memref<1x128xf32, #tpu.memory_space<vmem>>, %arg11: memref<128x128xbf16, #tpu.memory_space<vmem>>, %arg12: memref<1x128xf32, #tpu.memory_space<vmem>>, %arg13: memref<1x128xf32, #tpu.memory_space<vmem>>, %arg14: memref<1x8x16x128xf32, #tpu.memory_space<vmem>>, %arg15: memref<10x24x128xf32, #tpu.memory_space<vmem>>) attributes {dimension_semantics = [#tpu.dimension_semantics<parallel>, #tpu.dimension_semantics<parallel>], iteration_bounds = array<i64: 2, 2>, scalar_prefetch = 0 : i64, scratch_operands = 1 : i64, tpu.core_type = #tpu.core_type<tc>, window_params = [{transform_indices = @transform_0, window_bounds = array<i64: 1, 18, 16, 128>}, {pipeline_mode = #tpu.pipeline_mode<synchronous>, transform_indices = @transform_1, window_bounds = array<i64: 128, 128>}, {pipeline_mode = #tpu.pipeline_mode<synchronous>, transform_indices = @transform_2, window_bounds = array<i64: 1, 128>}, {pipeline_mode = #tpu.pipeline_mode<synchronous>, transform_indices = @transform_3, window_bounds = array<i64: 1, 128>}, {pipeline_mode = #tpu.pipeline_mode<synchronous>, transform_indices = @transform_4, window_bounds = array<i64: 1, 128>}, {pipeline_mode = #tpu.pipeline_mode<synchronous>, transform_indices = @transform_5, window_bounds = array<i64: 9, 128>}, {pipeline_mode = #tpu.pipeline_mode<synchronous>, transform_indices = @transform_6, window_bounds = array<i64: 1, 128>}, {pipeline_mode = #tpu.pipeline_mode<synchronous>, transform_indices = @transform_7, window_bounds = array<i64: 1, 128>}, {pipeline_mode = #tpu.pipeline_mode<synchronous>, transform_indices = @transform_8, window_bounds = array<i64: 1, 128>}, {pipeline_mode = #tpu.pipeline_mode<synchronous>, transform_indices = @transform_9, window_bounds = array<i64: 128, 128>}, {pipeline_mode = #tpu.pipeline_mode<synchronous>, transform_indices = @transform_10, window_bounds = array<i64: 1, 128>}, {pipeline_mode = #tpu.pipeline_mode<synchronous>, transform_indices = @transform_11, window_bounds = array<i64: 1, 128>}, {transform_indices = @transform_12, window_bounds = array<i64: 1, 8, 16, 128>}]} {
    %c8_i32 = arith.constant 8 : i32
    %0 = arith.muli %arg1, %c8_i32 : i32
    %c0 = arith.constant 0 : index
    %1 = arith.index_cast %0 : i32 to index
    %c0_0 = arith.constant 0 : index
    %c0_1 = arith.constant 0 : index
    %2 = vector.load %arg2[%c0, %1, %c0_0, %c0_1] : memref<1x18x16x128xbf16, #tpu.memory_space<vmem>>, vector<1x10x16x128xbf16>
    %3 = vector.shape_cast %2 : vector<1x10x16x128xbf16> to vector<160x128xbf16>
    %c0_2 = arith.constant 0 : index
    %c0_3 = arith.constant 0 : index
    %4 = vector.load %arg3[%c0_2, %c0_3] : memref<128x128xbf16, #tpu.memory_space<vmem>>, vector<128x128xbf16>
    %cst = arith.constant dense<0.000000e+00> : vector<160x128xf32>
    %5 = tpu.matmul %3, %4, %cst {dimension_numbers = #tpu.dot_dimension_numbers<[1], [0], [0], [1], [0, 0, 1, 1], [], []>} : vector<160x128xbf16>, vector<128x128xbf16>, vector<160x128xf32> -> vector<160x128xf32>
    %c0_4 = arith.constant 0 : index
    %c0_5 = arith.constant 0 : index
    %6 = vector.load %arg4[%c0_4, %c0_5] : memref<1x128xf32, #tpu.memory_space<vmem>>, vector<1x128xf32>
    %7 = vector.broadcast %6 : vector<1x128xf32> to vector<160x128xf32>
    %8 = arith.mulf %5, %7 : vector<160x128xf32>
    %c0_6 = arith.constant 0 : index
    %c0_7 = arith.constant 0 : index
    %9 = vector.load %arg5[%c0_6, %c0_7] : memref<1x128xf32, #tpu.memory_space<vmem>>, vector<1x128xf32>
    %10 = vector.broadcast %9 : vector<1x128xf32> to vector<160x128xf32>
    %11 = arith.addf %8, %10 : vector<160x128xf32>
    %cst_8 = arith.constant 0.000000e+00 : f32
    %12 = vector.broadcast %cst_8 : f32 to vector<160x128xf32>
    %13 = arith.cmpf ogt, %11, %12 : vector<160x128xf32>
    %c0_9 = arith.constant 0 : index
    %c0_10 = arith.constant 0 : index
    %14 = vector.load %arg6[%c0_9, %c0_10] : memref<1x128xf32, #tpu.memory_space<vmem>>, vector<1x128xf32>
    %15 = vector.broadcast %14 : vector<1x128xf32> to vector<160x128xf32>
    %16 = arith.mulf %15, %11 : vector<160x128xf32>
    %17 = arith.select %13, %11, %16 : vector<160x128xi1>, vector<160x128xf32>
    %18 = vector.shape_cast %17 : vector<160x128xf32> to vector<10x16x128xf32>
    %cst_11 = arith.constant 0.000000e+00 : f32
    %19 = vector.broadcast %cst_11 : f32 to vector<10x1x128xf32>
    %c0_12 = arith.constant 0 : index
    %c0_13 = arith.constant 0 : index
    %c0_14 = arith.constant 0 : index
    %20 = vector.load %arg15[%c0_12, %c0_13, %c0_14] : memref<10x24x128xf32, #tpu.memory_space<vmem>>, vector<10x1x128xf32>
    tpu.vector_store %arg15[%c0_12, %c0_13, %c0_14], %19 {strides = array<i32>} : memref<10x24x128xf32, #tpu.memory_space<vmem>>, vector<10x1x128xf32>,
    %cst_15 = arith.constant 0.000000e+00 : f32
    %21 = vector.broadcast %cst_15 : f32 to vector<10x7x128xf32>
    %c0_16 = arith.constant 0 : index
    %c17 = arith.constant 17 : index
    %c0_17 = arith.constant 0 : index
    %22 = vector.load %arg15[%c0_16, %c17, %c0_17] : memref<10x24x128xf32, #tpu.memory_space<vmem>>, vector<10x7x128xf32>
    tpu.vector_store %arg15[%c0_16, %c17, %c0_17], %21 {strides = array<i32>} : memref<10x24x128xf32, #tpu.memory_space<vmem>>, vector<10x7x128xf32>,
    %c0_18 = arith.constant 0 : index
    %c1 = arith.constant 1 : index
    %c0_19 = arith.constant 0 : index
    %23 = vector.load %arg15[%c0_18, %c1, %c0_19] : memref<10x24x128xf32, #tpu.memory_space<vmem>>, vector<10x16x128xf32>
    tpu.vector_store %arg15[%c0_18, %c1, %c0_19], %18 {strides = array<i32>} : memref<10x24x128xf32, #tpu.memory_space<vmem>>, vector<10x16x128xf32>,
    %c0_i32 = arith.constant 0 : i32
    %24 = arith.cmpi eq, %arg1, %c0_i32 : i32
    %25 = arith.extui %24 : i1 to i32
    %c0_i32_20 = arith.constant 0 : i32
    %26 = arith.cmpi ne, %25, %c0_i32_20 : i32
    scf.if %26 {
      %cst_79 = arith.constant 0.000000e+00 : f32
      %117 = vector.broadcast %cst_79 : f32 to vector<1x16x128xf32>
      %c0_80 = arith.constant 0 : index
      %c1_81 = arith.constant 1 : index
      %c0_82 = arith.constant 0 : index
      %118 = vector.load %arg15[%c0_80, %c1_81, %c0_82] : memref<10x24x128xf32, #tpu.memory_space<vmem>>, vector<1x16x128xf32>
      tpu.vector_store %arg15[%c0_80, %c1_81, %c0_82], %117 {strides = array<i32>} : memref<10x24x128xf32, #tpu.memory_space<vmem>>, vector<1x16x128xf32>,
    } else {
    }
    %c1_i32 = arith.constant 1 : i32
    %27 = arith.cmpi eq, %arg1, %c1_i32 : i32
    %28 = arith.extui %27 : i1 to i32
    %c0_i32_21 = arith.constant 0 : i32
    %29 = arith.cmpi ne, %28, %c0_i32_21 : i32
    scf.if %29 {
      %cst_79 = arith.constant 0.000000e+00 : f32
      %117 = vector.broadcast %cst_79 : f32 to vector<1x16x128xf32>
      %c9 = arith.constant 9 : index
      %c1_80 = arith.constant 1 : index
      %c0_81 = arith.constant 0 : index
      %118 = vector.load %arg15[%c9, %c1_80, %c0_81] : memref<10x24x128xf32, #tpu.memory_space<vmem>>, vector<1x16x128xf32>
      tpu.vector_store %arg15[%c9, %c1_80, %c0_81], %117 {strides = array<i32>} : memref<10x24x128xf32, #tpu.memory_space<vmem>>, vector<1x16x128xf32>,
    } else {
    }
    %cst_22 = arith.constant 0.000000e+00 : f32
    %30 = vector.broadcast %cst_22 : f32 to vector<8x16x128xf32>
    %c0_23 = arith.constant 0 : index
    %c0_24 = arith.constant 0 : index
    %31 = vector.load %arg7[%c0_23, %c0_24] : memref<9x128xf32, #tpu.memory_space<vmem>>, vector<1x128xf32>
    %c0_25 = arith.constant 0 : index
    %c0_26 = arith.constant 0 : index
    %c0_27 = arith.constant 0 : index
    %32 = vector.load %arg15[%c0_25, %c0_26, %c0_27] : memref<10x24x128xf32, #tpu.memory_space<vmem>>, vector<8x16x128xf32>
    %33 = vector.shape_cast %31 : vector<1x128xf32> to vector<1x1x128xf32>
    %34 = vector.broadcast %33 : vector<1x1x128xf32> to vector<8x16x128xf32>
    %35 = arith.mulf %32, %34 : vector<8x16x128xf32>
    %36 = arith.addf %30, %35 : vector<8x16x128xf32>
    %c1_28 = arith.constant 1 : index
    %c0_29 = arith.constant 0 : index
    %37 = vector.load %arg7[%c1_28, %c0_29] : memref<9x128xf32, #tpu.memory_space<vmem>>, vector<1x128xf32>
    %c0_30 = arith.constant 0 : index
    %c1_31 = arith.constant 1 : index
    %c0_32 = arith.constant 0 : index
    %38 = vector.load %arg15[%c0_30, %c1_31, %c0_32] : memref<10x24x128xf32, #tpu.memory_space<vmem>>, vector<8x16x128xf32>
    %39 = vector.shape_cast %37 : vector<1x128xf32> to vector<1x1x128xf32>
    %40 = vector.broadcast %39 : vector<1x1x128xf32> to vector<8x16x128xf32>
    %41 = arith.mulf %38, %40 : vector<8x16x128xf32>
    %42 = arith.addf %36, %41 : vector<8x16x128xf32>
    %c2 = arith.constant 2 : index
    %c0_33 = arith.constant 0 : index
    %43 = vector.load %arg7[%c2, %c0_33] : memref<9x128xf32, #tpu.memory_space<vmem>>, vector<1x128xf32>
    %c0_34 = arith.constant 0 : index
    %c2_35 = arith.constant 2 : index
    %c0_36 = arith.constant 0 : index
    %44 = vector.load %arg15[%c0_34, %c2_35, %c0_36] : memref<10x24x128xf32, #tpu.memory_space<vmem>>, vector<8x16x128xf32>
    %45 = vector.shape_cast %43 : vector<1x128xf32> to vector<1x1x128xf32>
    %46 = vector.broadcast %45 : vector<1x1x128xf32> to vector<8x16x128xf32>
    %47 = arith.mulf %44, %46 : vector<8x16x128xf32>
    %48 = arith.addf %42, %47 : vector<8x16x128xf32>
    %c3 = arith.constant 3 : index
    %c0_37 = arith.constant 0 : index
    %49 = vector.load %arg7[%c3, %c0_37] : memref<9x128xf32, #tpu.memory_space<vmem>>, vector<1x128xf32>
    %c1_38 = arith.constant 1 : index
    %c0_39 = arith.constant 0 : index
    %c0_40 = arith.constant 0 : index
    %50 = vector.load %arg15[%c1_38, %c0_39, %c0_40] : memref<10x24x128xf32, #tpu.memory_space<vmem>>, vector<8x16x128xf32>
    %51 = vector.shape_cast %49 : vector<1x128xf32> to vector<1x1x128xf32>
    %52 = vector.broadcast %51 : vector<1x1x128xf32> to vector<8x16x128xf32>
    %53 = arith.mulf %50, %52 : vector<8x16x128xf32>
    %54 = arith.addf %48, %53 : vector<8x16x128xf32>
    %c4 = arith.constant 4 : index
    %c0_41 = arith.constant 0 : index
    %55 = vector.load %arg7[%c4, %c0_41] : memref<9x128xf32, #tpu.memory_space<vmem>>, vector<1x128xf32>
    %c1_42 = arith.constant 1 : index
    %c1_43 = arith.constant 1 : index
    %c0_44 = arith.constant 0 : index
    %56 = vector.load %arg15[%c1_42, %c1_43, %c0_44] : memref<10x24x128xf32, #tpu.memory_space<vmem>>, vector<8x16x128xf32>
    %57 = vector.shape_cast %55 : vector<1x128xf32> to vector<1x1x128xf32>
    %58 = vector.broadcast %57 : vector<1x1x128xf32> to vector<8x16x128xf32>
    %59 = arith.mulf %56, %58 : vector<8x16x128xf32>
    %60 = arith.addf %54, %59 : vector<8x16x128xf32>
    %c5 = arith.constant 5 : index
    %c0_45 = arith.constant 0 : index
    %61 = vector.load %arg7[%c5, %c0_45] : memref<9x128xf32, #tpu.memory_space<vmem>>, vector<1x128xf32>
    %c1_46 = arith.constant 1 : index
    %c2_47 = arith.constant 2 : index
    %c0_48 = arith.constant 0 : index
    %62 = vector.load %arg15[%c1_46, %c2_47, %c0_48] : memref<10x24x128xf32, #tpu.memory_space<vmem>>, vector<8x16x128xf32>
    %63 = vector.shape_cast %61 : vector<1x128xf32> to vector<1x1x128xf32>
    %64 = vector.broadcast %63 : vector<1x1x128xf32> to vector<8x16x128xf32>
    %65 = arith.mulf %62, %64 : vector<8x16x128xf32>
    %66 = arith.addf %60, %65 : vector<8x16x128xf32>
    %c6 = arith.constant 6 : index
    %c0_49 = arith.constant 0 : index
    %67 = vector.load %arg7[%c6, %c0_49] : memref<9x128xf32, #tpu.memory_space<vmem>>, vector<1x128xf32>
    %c2_50 = arith.constant 2 : index
    %c0_51 = arith.constant 0 : index
    %c0_52 = arith.constant 0 : index
    %68 = vector.load %arg15[%c2_50, %c0_51, %c0_52] : memref<10x24x128xf32, #tpu.memory_space<vmem>>, vector<8x16x128xf32>
    %69 = vector.shape_cast %67 : vector<1x128xf32> to vector<1x1x128xf32>
    %70 = vector.broadcast %69 : vector<1x1x128xf32> to vector<8x16x128xf32>
    %71 = arith.mulf %68, %70 : vector<8x16x128xf32>
    %72 = arith.addf %66, %71 : vector<8x16x128xf32>
    %c7 = arith.constant 7 : index
    %c0_53 = arith.constant 0 : index
    %73 = vector.load %arg7[%c7, %c0_53] : memref<9x128xf32, #tpu.memory_space<vmem>>, vector<1x128xf32>
    %c2_54 = arith.constant 2 : index
    %c1_55 = arith.constant 1 : index
    %c0_56 = arith.constant 0 : index
    %74 = vector.load %arg15[%c2_54, %c1_55, %c0_56] : memref<10x24x128xf32, #tpu.memory_space<vmem>>, vector<8x16x128xf32>
    %75 = vector.shape_cast %73 : vector<1x128xf32> to vector<1x1x128xf32>
    %76 = vector.broadcast %75 : vector<1x1x128xf32> to vector<8x16x128xf32>
    %77 = arith.mulf %74, %76 : vector<8x16x128xf32>
    %78 = arith.addf %72, %77 : vector<8x16x128xf32>
    %c8 = arith.constant 8 : index
    %c0_57 = arith.constant 0 : index
    %79 = vector.load %arg7[%c8, %c0_57] : memref<9x128xf32, #tpu.memory_space<vmem>>, vector<1x128xf32>
    %c2_58 = arith.constant 2 : index
    %c2_59 = arith.constant 2 : index
    %c0_60 = arith.constant 0 : index
    %80 = vector.load %arg15[%c2_58, %c2_59, %c0_60] : memref<10x24x128xf32, #tpu.memory_space<vmem>>, vector<8x16x128xf32>
    %81 = vector.shape_cast %79 : vector<1x128xf32> to vector<1x1x128xf32>
    %82 = vector.broadcast %81 : vector<1x1x128xf32> to vector<8x16x128xf32>
    %83 = arith.mulf %80, %82 : vector<8x16x128xf32>
    %84 = arith.addf %78, %83 : vector<8x16x128xf32>
    %c0_61 = arith.constant 0 : index
    %c0_62 = arith.constant 0 : index
    %85 = vector.load %arg8[%c0_61, %c0_62] : memref<1x128xf32, #tpu.memory_space<vmem>>, vector<1x128xf32>
    %86 = vector.shape_cast %85 : vector<1x128xf32> to vector<1x1x128xf32>
    %87 = vector.broadcast %86 : vector<1x1x128xf32> to vector<8x16x128xf32>
    %88 = arith.mulf %84, %87 : vector<8x16x128xf32>
    %c0_63 = arith.constant 0 : index
    %c0_64 = arith.constant 0 : index
    %89 = vector.load %arg9[%c0_63, %c0_64] : memref<1x128xf32, #tpu.memory_space<vmem>>, vector<1x128xf32>
    %90 = vector.shape_cast %89 : vector<1x128xf32> to vector<1x1x128xf32>
    %91 = vector.broadcast %90 : vector<1x1x128xf32> to vector<8x16x128xf32>
    %92 = arith.addf %88, %91 : vector<8x16x128xf32>
    %cst_65 = arith.constant 0.000000e+00 : f32
    %93 = vector.broadcast %cst_65 : f32 to vector<8x16x128xf32>
    %94 = arith.cmpf ogt, %92, %93 : vector<8x16x128xf32>
    %c0_66 = arith.constant 0 : index
    %c0_67 = arith.constant 0 : index
    %95 = vector.load %arg10[%c0_66, %c0_67] : memref<1x128xf32, #tpu.memory_space<vmem>>, vector<1x128xf32>
    %96 = vector.shape_cast %95 : vector<1x128xf32> to vector<1x1x128xf32>
    %97 = vector.broadcast %96 : vector<1x1x128xf32> to vector<8x16x128xf32>
    %98 = arith.mulf %97, %92 : vector<8x16x128xf32>
    %99 = arith.select %94, %92, %98 : vector<8x16x128xi1>, vector<8x16x128xf32>
    %100 = vector.shape_cast %99 : vector<8x16x128xf32> to vector<128x128xf32>
    %101 = arith.truncf %100 : vector<128x128xf32> to vector<128x128xbf16>
    %c0_68 = arith.constant 0 : index
    %c0_69 = arith.constant 0 : index
    %102 = vector.load %arg11[%c0_68, %c0_69] : memref<128x128xbf16, #tpu.memory_space<vmem>>, vector<128x128xbf16>
    %cst_70 = arith.constant dense<0.000000e+00> : vector<128x128xf32>
    %103 = tpu.matmul %101, %102, %cst_70 {dimension_numbers = #tpu.dot_dimension_numbers<[1], [0], [0], [1], [0, 0, 1, 1], [], []>} : vector<128x128xbf16>, vector<128x128xbf16>, vector<128x128xf32> -> vector<128x128xf32>
    %c0_71 = arith.constant 0 : index
    %c0_72 = arith.constant 0 : index
    %104 = vector.load %arg12[%c0_71, %c0_72] : memref<1x128xf32, #tpu.memory_space<vmem>>, vector<1x128xf32>
    %105 = vector.broadcast %104 : vector<1x128xf32> to vector<128x128xf32>
    %106 = arith.mulf %103, %105 : vector<128x128xf32>
    %c0_73 = arith.constant 0 : index
    %c0_74 = arith.constant 0 : index
    %107 = vector.load %arg13[%c0_73, %c0_74] : memref<1x128xf32, #tpu.memory_space<vmem>>, vector<1x128xf32>
    %108 = vector.broadcast %107 : vector<1x128xf32> to vector<128x128xf32>
    %109 = arith.addf %106, %108 : vector<128x128xf32>
    %110 = vector.shape_cast %109 : vector<128x128xf32> to vector<8x16x128xf32>
    %111 = vector.extract_strided_slice %2 {offsets = [0, 1, 0, 0], sizes = [1, 8, 16, 128], strides = [1, 1, 1, 1]} : vector<1x10x16x128xbf16> to vector<1x8x16x128xbf16>
    %112 = vector.shape_cast %111 : vector<1x8x16x128xbf16> to vector<8x16x128xbf16>
    %113 = arith.extf %112 : vector<8x16x128xbf16> to vector<8x16x128xf32>
    %114 = arith.addf %110, %113 : vector<8x16x128xf32>
    %115 = vector.shape_cast %114 : vector<8x16x128xf32> to vector<1x8x16x128xf32>
    %c0_75 = arith.constant 0 : index
    %c0_76 = arith.constant 0 : index
    %c0_77 = arith.constant 0 : index
    %c0_78 = arith.constant 0 : index
    %116 = vector.load %arg14[%c0_75, %c0_76, %c0_77, %c0_78] : memref<1x8x16x128xf32, #tpu.memory_space<vmem>>, vector<1x8x16x128xf32>
    tpu.vector_store %arg14[%c0_75, %c0_76, %c0_77, %c0_78], %115 {strides = array<i32>} : memref<1x8x16x128xf32, #tpu.memory_space<vmem>>, vector<1x8x16x128xf32>,
    return
  }
  func.func @transform_0(%arg0: i32, %arg1: i32) -> (i32, i32, i32, i32) {
    %c0_i32 = arith.constant 0 : i32
    %c0_i32_0 = arith.constant 0 : i32
    %c0_i32_1 = arith.constant 0 : i32
    %c0_i32_2 = arith.constant 0 : i32
    return %arg0, %c0_i32, %c0_i32_0, %c0_i32_1 : i32, i32, i32, i32
  }
  func.func @transform_1(%arg0: i32, %arg1: i32) -> (i32, i32) {
    %c0_i32 = arith.constant 0 : i32
    %c0_i32_0 = arith.constant 0 : i32
    %c0_i32_1 = arith.constant 0 : i32
    return %c0_i32, %c0_i32_0 : i32, i32
  }
  func.func @transform_2(%arg0: i32, %arg1: i32) -> (i32, i32) {
    %c0_i32 = arith.constant 0 : i32
    %c0_i32_0 = arith.constant 0 : i32
    %c0_i32_1 = arith.constant 0 : i32
    return %c0_i32, %c0_i32_0 : i32, i32
  }
  func.func @transform_3(%arg0: i32, %arg1: i32) -> (i32, i32) {
    %c0_i32 = arith.constant 0 : i32
    %c0_i32_0 = arith.constant 0 : i32
    %c0_i32_1 = arith.constant 0 : i32
    return %c0_i32, %c0_i32_0 : i32, i32
  }
  func.func @transform_4(%arg0: i32, %arg1: i32) -> (i32, i32) {
    %c0_i32 = arith.constant 0 : i32
    %c0_i32_0 = arith.constant 0 : i32
    %c0_i32_1 = arith.constant 0 : i32
    return %c0_i32, %c0_i32_0 : i32, i32
  }
  func.func @transform_5(%arg0: i32, %arg1: i32) -> (i32, i32) {
    %c0_i32 = arith.constant 0 : i32
    %c0_i32_0 = arith.constant 0 : i32
    %c0_i32_1 = arith.constant 0 : i32
    return %c0_i32, %c0_i32_0 : i32, i32
  }
  func.func @transform_6(%arg0: i32, %arg1: i32) -> (i32, i32) {
    %c0_i32 = arith.constant 0 : i32
    %c0_i32_0 = arith.constant 0 : i32
    %c0_i32_1 = arith.constant 0 : i32
    return %c0_i32, %c0_i32_0 : i32, i32
  }
  func.func @transform_7(%arg0: i32, %arg1: i32) -> (i32, i32) {
    %c0_i32 = arith.constant 0 : i32
    %c0_i32_0 = arith.constant 0 : i32
    %c0_i32_1 = arith.constant 0 : i32
    return %c0_i32, %c0_i32_0 : i32, i32
  }
  func.func @transform_8(%arg0: i32, %arg1: i32) -> (i32, i32) {
    %c0_i32 = arith.constant 0 : i32
    %c0_i32_0 = arith.constant 0 : i32
    %c0_i32_1 = arith.constant 0 : i32
    return %c0_i32, %c0_i32_0 : i32, i32
  }
  func.func @transform_9(%arg0: i32, %arg1: i32) -> (i32, i32) {
    %c0_i32 = arith.constant 0 : i32
    %c0_i32_0 = arith.constant 0 : i32
    %c0_i32_1 = arith.constant 0 : i32
    return %c0_i32, %c0_i32_0 : i32, i32
  }
  func.func @transform_10(%arg0: i32, %arg1: i32) -> (i32, i32) {
    %c0_i32 = arith.constant 0 : i32
    %c0_i32_0 = arith.constant 0 : i32
    %c0_i32_1 = arith.constant 0 : i32
    return %c0_i32, %c0_i32_0 : i32, i32
  }
  func.func @transform_11(%arg0: i32, %arg1: i32) -> (i32, i32) {
    %c0_i32 = arith.constant 0 : i32
    %c0_i32_0 = arith.constant 0 : i32
    %c0_i32_1 = arith.constant 0 : i32
    return %c0_i32, %c0_i32_0 : i32, i32
  }
  func.func @transform_12(%arg0: i32, %arg1: i32) -> (i32, i32, i32, i32) {
    %c0_i32 = arith.constant 0 : i32
    %c0_i32_0 = arith.constant 0 : i32
    %c0_i32_1 = arith.constant 0 : i32
    return %arg0, %arg1, %c0_i32, %c0_i32_0 : i32, i32, i32, i32
  }
}

</mosaic_0001>

<llo_original>
// kernel: tpu_custom_call.1
$region0: #{tpu_custom_call.1}
  #allocation0 [shape = 'u32[]', space=smem, size = 0x4, offset = 0x4, fixed_abs, tag = 'smem constant byte address 0x4 - core index']
  #allocation1 [shape = 'u32[144,128]{1,0:T(1,128)}', space=vmem, size = 0x12000, scoped, tag = 'internal scratch']
  #allocation2 [shape = 'f32[10,24,128]{2,1,0:T(8,128)}', space=vmem, size = 0x1e000, scoped, tag = 'scratch operand']
  %s0 = inlined_call_operand.hbm [shape: bf16[2,18,16,128], index: 0, kind: input, shape index: {}]
  %s1 = inlined_call_operand.hbm [shape: bf16[128,128], index: 1, kind: input, shape index: {}]
  %s2 = inlined_call_operand.vmem [shape: f32[1,128], index: 2, kind: input, shape index: {}]
  %s3 = inlined_call_operand.vmem [shape: f32[1,128], index: 3, kind: input, shape index: {}]
  %s4 = inlined_call_operand.vmem [shape: f32[1,128], index: 4, kind: input, shape index: {}]
  %s5 = inlined_call_operand.hbm [shape: f32[9,128], index: 5, kind: input, shape index: {}]
  %s6 = inlined_call_operand.vmem [shape: f32[1,128], index: 6, kind: input, shape index: {}]
  %s7 = inlined_call_operand.vmem [shape: f32[1,128], index: 7, kind: input, shape index: {}]
  %s8 = inlined_call_operand.vmem [shape: f32[1,128], index: 8, kind: input, shape index: {}]
  %s9 = inlined_call_operand.hbm [shape: bf16[128,128], index: 9, kind: input, shape index: {}]
  %s10 = inlined_call_operand.vmem [shape: f32[1,128], index: 10, kind: input, shape index: {}]
  %s11 = inlined_call_operand.vmem [shape: f32[1,128], index: 11, kind: input, shape index: {}]
  %s12 = inlined_call_operand.hbm [shape: f32[2,16,16,128], index: 12, kind: output, shape index: {}]
  %s13 = sld [smem:[#allocation0]]
  $region105: #{tpu_custom_call.1} parent=0
    _
  %s15 = ssub.s32 1, %s13
  %s16 = scalar_select 0, %s15, %s13
  $region1: #{tpu_custom_call.1} parent=0
    #allocation3 [shape = 'u8[147456]{0}', space=vmem, size = 0x24000, scoped, tag = 'input window, operand 0']
    #allocation4 [shape = 's32[2]{0}', space=sflag, size = 0x8, scoped, tag = 'scoped memory for tpu_custom_call.1']
    #allocation5 [shape = 's32[2]{0}', space=sflag, size = 0x8, scoped, tag = 'scoped memory for tpu_custom_call.1']
    #allocation6 [shape = 'u8[32768]{0}', space=vmem, size = 0x8000, scoped, tag = 'input window, operand 1, single buffered']
    #allocation7 [shape = 's32[1]{0}', space=sflag, size = 0x4, scoped, tag = 'scoped memory for tpu_custom_call.1']
    #allocation8 [shape = 'u8[8192]{0}', space=vmem, size = 0x2000, scoped, tag = 'input window, operand 5, single buffered']
    #allocation9 [shape = 'u8[32768]{0}', space=vmem, size = 0x8000, scoped, tag = 'input window, operand 9, single buffered']
    #allocation10 [shape = 's32[1]{0}', space=sflag, size = 0x4, scoped, tag = 'scoped memory for tpu_custom_call.1']
    #allocation11 [shape = 'u8[131072]{0}', space=vmem, size = 0x20000, scoped, tag = 'output window, operand 0']
    %17 = vsyncpa [#allocation4], 0
    %s18 = scalar_lea.sflag [#allocation4], 1
    %19 = vsyncpa %s18, 0
    %20 = vsyncpa [#allocation7], 0
    %21 = vsyncpa [#allocation10], 0
    %22 = vsyncpa [#allocation5], 0
    %s23 = scalar_lea.sflag [#allocation5], 1
    %24 = vsyncpa %s23, 0
    loop: start=0, step=1, limit=6
    $region2: #{tpu_custom_call.1} parent=1 // loop_pre_header
      _
    $region3: #{tpu_custom_call.1} parent=1 // loop_header
      %s26 = sphi 0, %s30
      %p27 = scmp.ge.s32.totalorder %s26, 6
      %s33 = sphi 0, %s45
      %s34 = sphi 0, %s41
      %s35 = sphi 0, %s33
      %s36 = sphi 0, %s34
      %s37 = sphi 0, %s35
      %s38 = sphi 0, %s36
      %s48 = sphi 0, %s50
      %s51 = sphi 0, %s48
      %s52 = sphi 0, %s51
      %s68 = sphi 0, %s52
      %s72 = sphi 0, %s72
      %s74 = sphi 0, %s72
      %s75 = sphi 0, %s74
      %s89 = sphi 0, %s75
      %s93 = sphi 0, %s93
      %s95 = sphi 0, %s93
      %s96 = sphi 0, %s95
      %s110 = sphi 0, %s96
      %s114 = sphi 0, %s114
      %s116 = sphi 0, %s114
      %s117 = sphi 0, %s116
      %s131 = sphi 0, %s117
      %s135 = sphi 0, %s135
      %s137 = sphi 0, %s135
      %s138 = sphi 0, %s137
      %s152 = sphi 0, %s138
      %s156 = sphi 0, %s156
      %s158 = sphi 0, %s156
      %s159 = sphi 0, %s158
      %s173 = sphi 0, %s159
      %s177 = sphi 0, %s177
      %s179 = sphi 0, %s177
      %s180 = sphi 0, %s179
      %s194 = sphi 0, %s180
      %s198 = sphi 0, %s198
      %s200 = sphi 0, %s198
      %s201 = sphi 0, %s200
      %s215 = sphi 0, %s201
      %s219 = sphi 0, %s219
      %s221 = sphi 0, %s219
      %s222 = sphi 0, %s221
      %s236 = sphi 0, %s222
      %s240 = sphi 0, %s240
      %s242 = sphi 0, %s240
      %s243 = sphi 0, %s242
      %s257 = sphi 0, %s243
      %s261 = sphi 0, %s261
      %s263 = sphi 0, %s261
      %s264 = sphi 0, %s263
      %s278 = sphi 0, %s264
      %s282 = sphi 0, %s282
      %s284 = sphi 0, %s282
      %s285 = sphi 0, %s284
      %s299 = sphi 0, %s285
      %s307 = sphi 0, %s309
      %s310 = sphi 0, %s307
      %s311 = sphi 0, %s310
      %s327 = sphi 0, %s311
    $region4: #{tpu_custom_call.1} parent=1 // loop_header_branch
      %29 = sbr.rel (%p27) target = $region8
    $region5: #{tpu_custom_call.1} parent=1 // loop_body
      %s31 = ssub.s32 %s26, 1
      %s32 = ssub.s32 %s26, 2
      %s39 = sadd.s32 1, %s34
      %p40 = scmp.ge.s32.totalorder %s39, 2
      %s41 = scalar_select %p40, 0, %s39
      %s42 = sadd.s32 1, %s33
      %s43 = scalar_select %p40, %s42, %s33
      %p44 = scmp.ge.s32.totalorder %s43, 2
      %s45 = scalar_select %p44, 0, %s43
      %s46 = ssub.s32 %s33, %s45
      %p47 = scmp.eq.s32.totalorder %s46, 0
      %s49 = sadd.s32 %s48, 1
      %s50 = scalar_select %p47, %s48, %s49
      %p53 = pneg %p47
      %p54 = scmp.eq.s32.totalorder %s26, 3
      %p55 = por %p53, %p54
      %p56 = scmp.ne.s32.totalorder %s48, %s51
      %p57 = scmp.eq.s32.totalorder %s26, 0
      %p58 = por %p56, %p57
      %p59 = scmp.ne.s32.totalorder %s48, %s51
      %p60 = scmp.eq.s32.totalorder %s31, 3
      %p61 = por %p59, %p60
      %p62 = scmp.ne.s32.totalorder %s51, %s52
      %p63 = scmp.eq.s32.totalorder %s31, 0
      %p64 = por %p62, %p63
      %p65 = scmp.ne.s32.totalorder %s51, %s52
      %p66 = scmp.eq.s32.totalorder %s32, 3
      %p67 = por %p65, %p66
      %p69 = scmp.ne.s32.totalorder %s52, %s68
      %p70 = scmp.eq.s32.totalorder %s32, 0
      %p71 = por %p69, %p70
      %s73 = sadd.s32 %s72, 1
      %p76 = scmp.eq.s32.totalorder %s26, 3
      %p77 = scmp.ne.s32.totalorder %s72, %s74
      %p78 = scmp.eq.s32.totalorder %s26, 0
      %p79 = por %p77, %p78
      %p80 = scmp.ne.s32.totalorder %s72, %s74
      %p81 = scmp.eq.s32.totalorder %s31, 3
      %p82 = por %p80, %p81
      %p83 = scmp.ne.s32.totalorder %s74, %s75
      %p84 = scmp.eq.s32.totalorder %s31, 0
      %p85 = por %p83, %p84
      %p86 = scmp.ne.s32.totalorder %s74, %s75
      %p87 = scmp.eq.s32.totalorder %s32, 3
      %p88 = por %p86, %p87
      %p90 = scmp.ne.s32.totalorder %s75, %s89
      %p91 = scmp.eq.s32.totalorder %s32, 0
      %p92 = por %p90, %p91
      %s94 = sadd.s32 %s93, 1
      %p97 = scmp.eq.s32.totalorder %s26, 3
      %p98 = scmp.ne.s32.totalorder %s93, %s95
      %p99 = scmp.eq.s32.totalorder %s26, 0
      %p100 = por %p98, %p99
      %p101 = scmp.ne.s32.totalorder %s93, %s95
      %p102 = scmp.eq.s32.totalorder %s31, 3
      %p103 = por %p101, %p102
      %p104 = scmp.ne.s32.totalorder %s95, %s96
      %p105 = scmp.eq.s32.totalorder %s31, 0
      %p106 = por %p104, %p105
      %p107 = scmp.ne.s32.totalorder %s95, %s96
      %p108 = scmp.eq.s32.totalorder %s32, 3
      %p109 = por %p107, %p108
      %p111 = scmp.ne.s32.totalorder %s96, %s110
      %p112 = scmp.eq.s32.totalorder %s32, 0
      %p113 = por %p111, %p112
      %s115 = sadd.s32 %s114, 1
      %p118 = scmp.eq.s32.totalorder %s26, 3
      %p119 = scmp.ne.s32.totalorder %s114, %s116
      %p120 = scmp.eq.s32.totalorder %s26, 0
      %p121 = por %p119, %p120
      %p122 = scmp.ne.s32.totalorder %s114, %s116
      %p123 = scmp.eq.s32.totalorder %s31, 3
      %p124 = por %p122, %p123
      %p125 = scmp.ne.s32.totalorder %s116, %s117
      %p126 = scmp.eq.s32.totalorder %s31, 0
      %p127 = por %p125, %p126
      %p128 = scmp.ne.s32.totalorder %s116, %s117
      %p129 = scmp.eq.s32.totalorder %s32, 3
      %p130 = por %p128, %p129
      %p132 = scmp.ne.s32.totalorder %s117, %s131
      %p133 = scmp.eq.s32.totalorder %s32, 0
      %p134 = por %p132, %p133
      %s136 = sadd.s32 %s135, 1
      %p139 = scmp.eq.s32.totalorder %s26, 3
      %p140 = scmp.ne.s32.totalorder %s135, %s137
      %p141 = scmp.eq.s32.totalorder %s26, 0
      %p142 = por %p140, %p141
      %p143 = scmp.ne.s32.totalorder %s135, %s137
      %p144 = scmp.eq.s32.totalorder %s31, 3
      %p145 = por %p143, %p144
      %p146 = scmp.ne.s32.totalorder %s137, %s138
      %p147 = scmp.eq.s32.totalorder %s31, 0
      %p148 = por %p146, %p147
      %p149 = scmp.ne.s32.totalorder %s137, %s138
      %p150 = scmp.eq.s32.totalorder %s32, 3
      %p151 = por %p149, %p150
      %p153 = scmp.ne.s32.totalorder %s138, %s152
      %p154 = scmp.eq.s32.totalorder %s32, 0
      %p155 = por %p153, %p154
      %s157 = sadd.s32 %s156, 1
      %p160 = scmp.eq.s32.totalorder %s26, 3
      %p161 = scmp.ne.s32.totalorder %s156, %s158
      %p162 = scmp.eq.s32.totalorder %s26, 0
      %p163 = por %p161, %p162
      %p164 = scmp.ne.s32.totalorder %s156, %s158
      %p165 = scmp.eq.s32.totalorder %s31, 3
      %p166 = por %p164, %p165
      %p167 = scmp.ne.s32.totalorder %s158, %s159
      %p168 = scmp.eq.s32.totalorder %s31, 0
      %p169 = por %p167, %p168
      %p170 = scmp.ne.s32.totalorder %s158, %s159
      %p171 = scmp.eq.s32.totalorder %s32, 3
      %p172 = por %p170, %p171
      %p174 = scmp.ne.s32.totalorder %s159, %s173
      %p175 = scmp.eq.s32.totalorder %s32, 0
      %p176 = por %p174, %p175
      %s178 = sadd.s32 %s177, 1
      %p181 = scmp.eq.s32.totalorder %s26, 3
      %p182 = scmp.ne.s32.totalorder %s177, %s179
      %p183 = scmp.eq.s32.totalorder %s26, 0
      %p184 = por %p182, %p183
      %p185 = scmp.ne.s32.totalorder %s177, %s179
      %p186 = scmp.eq.s32.totalorder %s31, 3
      %p187 = por %p185, %p186
      %p188 = scmp.ne.s32.totalorder %s179, %s180
      %p189 = scmp.eq.s32.totalorder %s31, 0
      %p190 = por %p188, %p189
      %p191 = scmp.ne.s32.totalorder %s179, %s180
      %p192 = scmp.eq.s32.totalorder %s32, 3
      %p193 = por %p191, %p192
      %p195 = scmp.ne.s32.totalorder %s180, %s194
      %p196 = scmp.eq.s32.totalorder %s32, 0
      %p197 = por %p195, %p196
      %s199 = sadd.s32 %s198, 1
      %p202 = scmp.eq.s32.totalorder %s26, 3
      %p203 = scmp.ne.s32.totalorder %s198, %s200
      %p204 = scmp.eq.s32.totalorder %s26, 0
      %p205 = por %p203, %p204
      %p206 = scmp.ne.s32.totalorder %s198, %s200
      %p207 = scmp.eq.s32.totalorder %s31, 3
      %p208 = por %p206, %p207
      %p209 = scmp.ne.s32.totalorder %s200, %s201
      %p210 = scmp.eq.s32.totalorder %s31, 0
      %p211 = por %p209, %p210
      %p212 = scmp.ne.s32.totalorder %s200, %s201
      %p213 = scmp.eq.s32.totalorder %s32, 3
      %p214 = por %p212, %p213
      %p216 = scmp.ne.s32.totalorder %s201, %s215
      %p217 = scmp.eq.s32.totalorder %s32, 0
      %p218 = por %p216, %p217
      %s220 = sadd.s32 %s219, 1
      %p223 = scmp.eq.s32.totalorder %s26, 3
      %p224 = scmp.ne.s32.totalorder %s219, %s221
      %p225 = scmp.eq.s32.totalorder %s26, 0
      %p226 = por %p224, %p225
      %p227 = scmp.ne.s32.totalorder %s219, %s221
      %p228 = scmp.eq.s32.totalorder %s31, 3
      %p229 = por %p227, %p228
      %p230 = scmp.ne.s32.totalorder %s221, %s222
      %p231 = scmp.eq.s32.totalorder %s31, 0
      %p232 = por %p230, %p231
      %p233 = scmp.ne.s32.totalorder %s221, %s222
      %p234 = scmp.eq.s32.totalorder %s32, 3
      %p235 = por %p233, %p234
      %p237 = scmp.ne.s32.totalorder %s222, %s236
      %p238 = scmp.eq.s32.totalorder %s32, 0
      %p239 = por %p237, %p238
      %s241 = sadd.s32 %s240, 1
      %p244 = scmp.eq.s32.totalorder %s26, 3
      %p245 = scmp.ne.s32.totalorder %s240, %s242
      %p246 = scmp.eq.s32.totalorder %s26, 0
      %p247 = por %p245, %p246
      %p248 = scmp.ne.s32.totalorder %s240, %s242
      %p249 = scmp.eq.s32.totalorder %s31, 3
      %p250 = por %p248, %p249
      %p251 = scmp.ne.s32.totalorder %s242, %s243
      %p252 = scmp.eq.s32.totalorder %s31, 0
      %p253 = por %p251, %p252
      %p254 = scmp.ne.s32.totalorder %s242, %s243
      %p255 = scmp.eq.s32.totalorder %s32, 3
      %p256 = por %p254, %p255
      %p258 = scmp.ne.s32.totalorder %s243, %s257
      %p259 = scmp.eq.s32.totalorder %s32, 0
      %p260 = por %p258, %p259
      %s262 = sadd.s32 %s261, 1
      %p265 = scmp.eq.s32.totalorder %s26, 3
      %p266 = scmp.ne.s32.totalorder %s261, %s263
      %p267 = scmp.eq.s32.totalorder %s26, 0
      %p268 = por %p266, %p267
      %p269 = scmp.ne.s32.totalorder %s261, %s263
      %p270 = scmp.eq.s32.totalorder %s31, 3
      %p271 = por %p269, %p270
      %p272 = scmp.ne.s32.totalorder %s263, %s264
      %p273 = scmp.eq.s32.totalorder %s31, 0
      %p274 = por %p272, %p273
      %p275 = scmp.ne.s32.totalorder %s263, %s264
      %p276 = scmp.eq.s32.totalorder %s32, 3
      %p277 = por %p275, %p276
      %p279 = scmp.ne.s32.totalorder %s264, %s278
      %p280 = scmp.eq.s32.totalorder %s32, 0
      %p281 = por %p279, %p280
      %s283 = sadd.s32 %s282, 1
      %p286 = scmp.eq.s32.totalorder %s26, 3
      %p287 = scmp.ne.s32.totalorder %s282, %s284
      %p288 = scmp.eq.s32.totalorder %s26, 0
      %p289 = por %p287, %p288
      %p290 = scmp.ne.s32.totalorder %s282, %s284
      %p291 = scmp.eq.s32.totalorder %s31, 3
      %p292 = por %p290, %p291
      %p293 = scmp.ne.s32.totalorder %s284, %s285
      %p294 = scmp.eq.s32.totalorder %s31, 0
      %p295 = por %p293, %p294
      %p296 = scmp.ne.s32.totalorder %s284, %s285
      %p297 = scmp.eq.s32.totalorder %s32, 3
      %p298 = por %p296, %p297
      %p300 = scmp.ne.s32.totalorder %s285, %s299
      %p301 = scmp.eq.s32.totalorder %s32, 0
      %p302 = por %p300, %p301
      %s303 = ssub.s32 %s33, %s45
      %s304 = ssub.s32 %s34, %s41
      %s305 = sor.u32 %s303, %s304
      %p306 = scmp.eq.s32.totalorder %s305, 0
      %s308 = sadd.s32 %s307, 1
      %s309 = scalar_select %p306, %s307, %s308
      %p312 = pneg %p306
      %p313 = scmp.eq.s32.totalorder %s26, 3
      %p314 = por %p312, %p313
      %p315 = scmp.ne.s32.totalorder %s307, %s310
      %p316 = scmp.eq.s32.totalorder %s26, 0
      %p317 = por %p315, %p316
      %p318 = scmp.ne.s32.totalorder %s307, %s310
      %p319 = scmp.eq.s32.totalorder %s31, 3
      %p320 = por %p318, %p319
      %p321 = scmp.ne.s32.totalorder %s310, %s311
      %p322 = scmp.eq.s32.totalorder %s31, 0
      %p323 = por %p321, %p322
      %p324 = scmp.ne.s32.totalorder %s310, %s311
      %p325 = scmp.eq.s32.totalorder %s32, 3
      %p326 = por %p324, %p325
      %p328 = scmp.ne.s32.totalorder %s311, %s327
      %p329 = scmp.eq.s32.totalorder %s32, 0
      %p330 = por %p328, %p329
      %p331 = scmp.le.s32.totalorder 1, %s26
      %p332 = scmp.lt.s32.totalorder %s26, 5
      %p333 = pnand %p331, %p332
      %p334 = pneg %p333
      // Predicated region
      $region9: #{tpu_custom_call.1} parent=5 // pred_check
        _
      $region10: #{tpu_custom_call.1} parent=5 // pred_check_branch
        %336 = sbr.rel (%p333) target = $region12
      $region11: #{tpu_custom_call.1} parent=5 // pred_region
        %s337 = ssub.s32 %s26, 1
        // Predicated region
        $region13: #{tpu_custom_call.1} parent=11 // pred_check
          %p338 = pneg %p85
        $region14: #{tpu_custom_call.1} parent=11 // pred_check_branch
          %340 = sbr.rel (%p338) target = $region16
        $region15: #{tpu_custom_call.1} parent=11 // pred_region
          %s342 = ssub.s32 1024, 1024
          %343 = vsyncadd [#allocation7], %s342
          %s344 = sshll.u32 [#allocation6], 4
          %s345 = int_to_ptr.vmem [resolvable:$true] %s344
          %350 = dma.hbm_to_vmem [thread:$0]  %s1, 1024, %s345, [#allocation7], 64, 64, 4
        $region16: #{tpu_custom_call.1} parent=11 // pred_fallthru
          _
        // Predicated region
        $region17: #{tpu_custom_call.1} parent=11 // pred_check
          %p351 = pneg %p106
        $region18: #{tpu_custom_call.1} parent=11 // pred_check_branch
          %353 = sbr.rel (%p351) target = $region20
        $region19: #{tpu_custom_call.1} parent=11 // pred_region
          _
        $region20: #{tpu_custom_call.1} parent=11 // pred_fallthru
          _
        // Predicated region
        $region21: #{tpu_custom_call.1} parent=11 // pred_check
          %p354 = pneg %p127
        $region22: #{tpu_custom_call.1} parent=11 // pred_check_branch
          %356 = sbr.rel (%p354) target = $region24
        $region23: #{tpu_custom_call.1} parent=11 // pred_region
          _
        $region24: #{tpu_custom_call.1} parent=11 // pred_fallthru
          _
        // Predicated region
        $region25: #{tpu_custom_call.1} parent=11 // pred_check
          %p357 = pneg %p148
        $region26: #{tpu_custom_call.1} parent=11 // pred_check_branch
          %359 = sbr.rel (%p357) target = $region28
        $region27: #{tpu_custom_call.1} parent=11 // pred_region
          _
        $region28: #{tpu_custom_call.1} parent=11 // pred_fallthru
          _
        // Predicated region
        $region29: #{tpu_custom_call.1} parent=11 // pred_check
          %p360 = pneg %p169
        $region30: #{tpu_custom_call.1} parent=11 // pred_check_branch
          %362 = sbr.rel (%p360) target = $region32
        $region31: #{tpu_custom_call.1} parent=11 // pred_region
          %s364 = ssub.s32 256, 256
          %365 = vsyncadd [#allocation7], %s364
          %s366 = sshll.u32 [#allocation8], 4
          %s367 = int_to_ptr.vmem [resolvable:$true] %s366
          %372 = dma.hbm_to_vmem [thread:$0]  %s5, 256, %s367, [#allocation7], 128, 128, 8
        $region32: #{tpu_custom_call.1} parent=11 // pred_fallthru
          _
        // Predicated region
        $region33: #{tpu_custom_call.1} parent=11 // pred_check
          %p373 = pneg %p190
        $region34: #{tpu_custom_call.1} parent=11 // pred_check_branch
          %375 = sbr.rel (%p373) target = $region36
        $region35: #{tpu_custom_call.1} parent=11 // pred_region
          _
        $region36: #{tpu_custom_call.1} parent=11 // pred_fallthru
          _
        // Predicated region
        $region37: #{tpu_custom_call.1} parent=11 // pred_check
          %p376 = pneg %p211
        $region38: #{tpu_custom_call.1} parent=11 // pred_check_branch
          %378 = sbr.rel (%p376) target = $region40
        $region39: #{tpu_custom_call.1} parent=11 // pred_region
          _
        $region40: #{tpu_custom_call.1} parent=11 // pred_fallthru
          _
        // Predicated region
        $region41: #{tpu_custom_call.1} parent=11 // pred_check
          %p379 = pneg %p232
        $region42: #{tpu_custom_call.1} parent=11 // pred_check_branch
          %381 = sbr.rel (%p379) target = $region44
        $region43: #{tpu_custom_call.1} parent=11 // pred_region
          _
        $region44: #{tpu_custom_call.1} parent=11 // pred_fallthru
          _
        // Predicated region
        $region45: #{tpu_custom_call.1} parent=11 // pred_check
          %p382 = pneg %p253
        $region46: #{tpu_custom_call.1} parent=11 // pred_check_branch
          %384 = sbr.rel (%p382) target = $region48
        $region47: #{tpu_custom_call.1} parent=11 // pred_region
          %s386 = ssub.s32 1024, 1024
          %387 = vsyncadd [#allocation10], %s386
          %s388 = sshll.u32 [#allocation9], 4
          %s389 = int_to_ptr.vmem [resolvable:$true] %s388
          %394 = dma.hbm_to_vmem [thread:$0]  %s9, 1024, %s389, [#allocation10], 64, 64, 4
        $region48: #{tpu_custom_call.1} parent=11 // pred_fallthru
          _
        // Predicated region
        $region49: #{tpu_custom_call.1} parent=11 // pred_check
          %p395 = pneg %p274
        $region50: #{tpu_custom_call.1} parent=11 // pred_check_branch
          %397 = sbr.rel (%p395) target = $region52
        $region51: #{tpu_custom_call.1} parent=11 // pred_region
          _
        $region52: #{tpu_custom_call.1} parent=11 // pred_fallthru
          _
        // Predicated region
        $region53: #{tpu_custom_call.1} parent=11 // pred_check
          %p398 = pneg %p295
        $region54: #{tpu_custom_call.1} parent=11 // pred_check_branch
          %400 = sbr.rel (%p398) target = $region56
        $region55: #{tpu_custom_call.1} parent=11 // pred_region
          _
        $region56: #{tpu_custom_call.1} parent=11 // pred_fallthru
          _
      $region12: #{tpu_custom_call.1} parent=5 // pred_fallthru
        _
      %p401 = scmp.lt.s32.totalorder %s26, 4
      // Predicated region
      $region57: #{tpu_custom_call.1} parent=5 // pred_check
        %p402 = pneg %p401
      $region58: #{tpu_custom_call.1} parent=5 // pred_check_branch
        %404 = sbr.rel (%p402) target = $region60
      $region59: #{tpu_custom_call.1} parent=5 // pred_region
        // Predicated region
        $region61: #{tpu_custom_call.1} parent=59 // pred_check
          %p405 = pneg %p58
        $region62: #{tpu_custom_call.1} parent=59 // pred_check_branch
          %407 = sbr.rel (%p405) target = $region64
        $region63: #{tpu_custom_call.1} parent=59 // pred_region
          %s408 = sand.u32 %s48, 1
          %s409 = scalar_lea.sflag [#allocation4], %s408
          %s410 = sand.u32 %s48, 1
          %s411 = smul.addr %s410, 144
          %s412 = scalar_lea.vmem [#allocation3], %s411
          %s414 = ssub.s32 2304, 2304
          %415 = vsyncadd %s409, %s414
          %s416 = smul.addr %s33, 36
          %s417 = smul.addr %s416, 64
          %s418 = scalar_lea.hbm %s0, %s417
          %s419 = sshll.u32 %s412, 4
          %s420 = int_to_ptr.vmem [resolvable:$true] %s419
          %425 = dma.hbm_to_vmem [thread:$0]  %s418, 2304, %s420, %s409, 64, 64, 4
        $region64: #{tpu_custom_call.1} parent=59 // pred_fallthru
          _
      $region60: #{tpu_custom_call.1} parent=5 // pred_fallthru
        _
      %p426 = scmp.le.s32.totalorder 1, %s26
      %p427 = scmp.lt.s32.totalorder %s26, 5
      %p428 = pnand %p426, %p427
      %p429 = pneg %p428
      // Predicated region
      $region65: #{tpu_custom_call.1} parent=5 // pred_check
        _
      $region66: #{tpu_custom_call.1} parent=5 // pred_check_branch
        %431 = sbr.rel (%p428) target = $region68
      $region67: #{tpu_custom_call.1} parent=5 // pred_region
        %s432 = ssub.s32 %s26, 1
        %s433 = sand.u32 %s51, 1
        %s434 = scalar_lea.sflag [#allocation4], %s433
        %s435 = sand.u32 %s51, 1
        %s436 = smul.addr %s435, 144
        %s437 = scalar_lea.vmem [#allocation3], %s436
        // Predicated region
        $region69: #{tpu_custom_call.1} parent=67 // pred_check
          %p438 = pneg %p64
        $region70: #{tpu_custom_call.1} parent=67 // pred_check_branch
          %440 = sbr.rel (%p438) target = $region72
        $region71: #{tpu_custom_call.1} parent=67 // pred_region
          %441 = dma.done %s434, 2304
        $region72: #{tpu_custom_call.1} parent=67 // pred_fallthru
          _
        // Predicated region
        $region73: #{tpu_custom_call.1} parent=67 // pred_check
          %p442 = pneg %p85
        $region74: #{tpu_custom_call.1} parent=67 // pred_check_branch
          %444 = sbr.rel (%p442) target = $region76
        $region75: #{tpu_custom_call.1} parent=67 // pred_region
          %445 = dma.done [#allocation7], 1024
        $region76: #{tpu_custom_call.1} parent=67 // pred_fallthru
          _
        // Predicated region
        $region77: #{tpu_custom_call.1} parent=67 // pred_check
          %p446 = pneg %p169
        $region78: #{tpu_custom_call.1} parent=67 // pred_check_branch
          %448 = sbr.rel (%p446) target = $region80
        $region79: #{tpu_custom_call.1} parent=67 // pred_region
          %449 = dma.done [#allocation7], 256
        $region80: #{tpu_custom_call.1} parent=67 // pred_fallthru
          _
        // Predicated region
        $region81: #{tpu_custom_call.1} parent=67 // pred_check
          %p450 = pneg %p253
        $region82: #{tpu_custom_call.1} parent=67 // pred_check_branch
          %452 = sbr.rel (%p450) target = $region84
        $region83: #{tpu_custom_call.1} parent=67 // pred_region
          %453 = dma.done [#allocation10], 1024
        $region84: #{tpu_custom_call.1} parent=67 // pred_fallthru
          _
        %s454 = sand.u32 %s51, 1
        %s455 = scalar_lea.sflag [#allocation4], %s454
        %s456 = sand.u32 %s51, 1
        %s457 = smul.addr %s456, 144
        %s458 = scalar_lea.vmem [#allocation3], %s457
        %p459 = pneg %p64
        %p460 = pneg %p61
        %p461 = pneg %p85
        %p462 = pneg %p82
        %p463 = pneg %p106
        %p464 = pneg %p103
        %p465 = pneg %p127
        %p466 = pneg %p124
        %p467 = pneg %p148
        %p468 = pneg %p145
        %p469 = pneg %p169
        %p470 = pneg %p166
        %p471 = pneg %p190
        %p472 = pneg %p187
        %p473 = pneg %p211
        %p474 = pneg %p208
        %p475 = pneg %p232
        %p476 = pneg %p229
        %p477 = pneg %p253
        %p478 = pneg %p250
        %p479 = pneg %p274
        %p480 = pneg %p271
        %p481 = pneg %p295
        %p482 = pneg %p292
        %p483 = pneg %p323
        %p484 = pneg %p320
        %s485 = sand.u32 %s310, 1
        %s486 = scalar_lea.sflag [#allocation5], %s485
        %s487 = sand.u32 %s310, 1
        %s488 = smul.addr %s487, 128
        %s489 = scalar_lea.vmem [#allocation11], %s488
        %s490 = smul.u32 8, %s36
        %s492 = smul.u32 %s36, 8
        %s493 = smul.u32 %s492, 2
        %s494 = smul.addr %s493, 4
        %s495 = scalar_lea.vmem %s437, %s494 [#allocation3]
        %v496 = vld [vmem:[%s495] sm:$0xf]
        %v497 = vld [vmem:[%s495 + $0x4] sm:$0xf]
        %v498 = vld [vmem:[%s495 + $0x8] sm:$0xf]
        %v499 = vld [vmem:[%s495 + $0xc] sm:$0xf]
        %v500 = vld [vmem:[%s495 + $0x10] sm:$0xf]
        %v501 = vld [vmem:[%s495 + $0x14] sm:$0xf]
        %v502 = vld [vmem:[%s495 + $0x18] sm:$0xf]
        %v503 = vld [vmem:[%s495 + $0x1c] sm:$0xf]
        %v504 = vld [vmem:[%s495 + $0x20] sm:$0xf]
        %v505 = vld [vmem:[%s495 + $0x24] sm:$0xf]
        %v506 = vld [vmem:[%s495 + $0x28] sm:$0xf]
        %v507 = vld [vmem:[%s495 + $0x2c] sm:$0xf]
        %v508 = vld [vmem:[%s495 + $0x30] sm:$0xf]
        %v509 = vld [vmem:[%s495 + $0x34] sm:$0xf]
        %v510 = vld [vmem:[%s495 + $0x38] sm:$0xf]
        %v511 = vld [vmem:[%s495 + $0x3c] sm:$0xf]
        %v512 = vld [vmem:[%s495 + $0x40] sm:$0xf]
        %v513 = vld [vmem:[%s495 + $0x44] sm:$0xf]
        %v514 = vld [vmem:[%s495 + $0x48] sm:$0xf]
        %v515 = vld [vmem:[%s495 + $0x4c] sm:$0xf]
        %v516 = vld [vmem:[#allocation6] sm:$0xf]
        %v517 = vld [vmem:[#allocation6 + $0x4] sm:$0xf]
        %v518 = vld [vmem:[#allocation6 + $0x8] sm:$0xf]
        %v519 = vld [vmem:[#allocation6 + $0xc] sm:$0xf]
        %v520 = vld [vmem:[#allocation6 + $0x10] sm:$0xf]
        %v521 = vld [vmem:[#allocation6 + $0x14] sm:$0xf]
        %v522 = vld [vmem:[#allocation6 + $0x18] sm:$0xf]
        %v523 = vld [vmem:[#allocation6 + $0x1c] sm:$0xf]
        %v524 = vld [vmem:[#allocation6 + $0x20] sm:$0xf]
        %v525 = vld [vmem:[#allocation6 + $0x24] sm:$0xf]
        %v526 = vld [vmem:[#allocation6 + $0x28] sm:$0xf]
        %v527 = vld [vmem:[#allocation6 + $0x2c] sm:$0xf]
        %v528 = vld [vmem:[#allocation6 + $0x30] sm:$0xf]
        %v529 = vld [vmem:[#allocation6 + $0x34] sm:$0xf]
        %v530 = vld [vmem:[#allocation6 + $0x38] sm:$0xf]
        %v531 = vld [vmem:[#allocation6 + $0x3c] sm:$0xf]
        %v552 = vunpack.c.l.b16 %v496
        %v553 = vunpack.c.l.b16 %v497
        %v554 = vunpack.c.l.b16 %v498
        %v555 = vunpack.c.l.b16 %v499
        %v556 = vunpack.c.l.b16 %v500
        %v557 = vunpack.c.l.b16 %v501
        %v558 = vunpack.c.l.b16 %v502
        %v559 = vunpack.c.l.b16 %v503
        %v560 = vunpack.c.l.b16 %v504
        %v561 = vunpack.c.l.b16 %v505
        %v562 = vunpack.c.l.b16 %v506
        %v563 = vunpack.c.l.b16 %v507
        %v564 = vunpack.c.l.b16 %v508
        %v565 = vunpack.c.l.b16 %v509
        %v566 = vunpack.c.l.b16 %v510
        %v567 = vunpack.c.l.b16 %v511
        %v568 = vunpack.c.l.b16 %v512
        %v569 = vunpack.c.l.b16 %v513
        %v570 = vunpack.c.l.b16 %v514
        %v571 = vunpack.c.l.b16 %v515
        %v572 = vpack.c.b16 %v553, %v552
        %v573 = vpack.c.b16 %v555, %v554
        %v574 = vpack.c.b16 %v557, %v556
        %v575 = vpack.c.b16 %v559, %v558
        %v576 = vpack.c.b16 %v561, %v560
        %v577 = vpack.c.b16 %v563, %v562
        %v578 = vpack.c.b16 %v565, %v564
        %v579 = vpack.c.b16 %v567, %v566
        %v580 = vpack.c.b16 %v569, %v568
        %v581 = vpack.c.b16 %v571, %v570
        %v608 = vunpack.c.l.b16 %v516
        %v609 = vunpack.c.l.b16 %v517
        %v610 = vunpack.c.l.b16 %v518
        %v611 = vunpack.c.l.b16 %v519
        %v612 = vunpack.c.l.b16 %v520
        %v613 = vunpack.c.l.b16 %v521
        %v614 = vunpack.c.l.b16 %v522
        %v615 = vunpack.c.l.b16 %v523
        %v616 = vunpack.c.l.b16 %v524
        %v617 = vunpack.c.l.b16 %v525
        %v618 = vunpack.c.l.b16 %v526
        %v619 = vunpack.c.l.b16 %v527
        %v620 = vunpack.c.l.b16 %v528
        %v621 = vunpack.c.l.b16 %v529
        %v622 = vunpack.c.l.b16 %v530
        %v623 = vunpack.c.l.b16 %v531
        %v624 = vpack.c.b16 %v609, %v608
        %v625 = vpack.c.b16 %v611, %v610
        %v626 = vpack.c.b16 %v613, %v612
        %v627 = vpack.c.b16 %v615, %v614
        %v628 = vpack.c.b16 %v617, %v616
        %v629 = vpack.c.b16 %v619, %v618
        %v630 = vpack.c.b16 %v621, %v620
        %v631 = vpack.c.b16 %v623, %v622
        %640 = vmatprep.subr.bf16.mxu0 0
        %641 = vmatpush1.bf16.msra.mxu0 %v631
        %642 = vmatprep.subr.bf16.mxu0 0
        %643 = vmatpush1.bf16.msra.mxu0 %v630
        %644 = vmatprep.subr.bf16.mxu0 0
        %645 = vmatpush1.bf16.msra.mxu0 %v629
        %646 = vmatprep.subr.bf16.mxu0 0
        %647 = vmatpush1.bf16.msra.mxu0 %v628
        %648 = vmatprep.subr.bf16.mxu0 0
        %649 = vmatpush1.bf16.msra.mxu0 %v627
        %650 = vmatprep.subr.bf16.mxu0 0
        %651 = vmatpush1.bf16.msra.mxu0 %v626
        %652 = vmatprep.subr.bf16.mxu0 0
        %653 = vmatpush1.bf16.msra.mxu0 %v625
        %654 = vmatprep.subr.bf16.mxu0 0
        %655 = vmatpush1.bf16.msra.mxu0 %v624
        %656 = vmatprep.subr.bf16.mxu0 0
        %657 = vmatpush2.bf16.msra.mxu0 0
        %658 = vmatprep.subr.bf16.mxu0 0
        %659 = vmatpush2.bf16.msra.mxu0 0
        %660 = vmatprep.subr.bf16.mxu0 0
        %661 = vmatpush2.bf16.msra.mxu0 0
        %662 = vmatprep.subr.bf16.mxu0 0
        %663 = vmatpush2.bf16.msra.mxu0 0
        %664 = vmatprep.subr.bf16.mxu0 0
        %665 = vmatpush2.bf16.msra.mxu0 0
        %666 = vmatprep.subr.bf16.mxu0 0
        %667 = vmatpush2.bf16.msra.mxu0 0
        %668 = vmatprep.subr.bf16.mxu0 0
        %669 = vmatpush2.bf16.msra.mxu0 0
        %670 = vmatprep.subr.bf16.mxu0 0
        %671 = vmatpush2.bf16.msra.mxu0 0
        %672 = vmatprep.mubr.bf16.mxu0 0
        %673 = vmatmul.mubr.bf16.gmra.mxu0 %v572
        %v674 = vpop.f32.mrf.mxu0
        %v675 = vadd.f32 0.0, %v674
        %v676 = vpop.f32.mrf.mxu0
        %v677 = vpop.f32.mrf.mxu0
        %v678 = vadd.f32 0.0, %v677
        %v679 = vpop.f32.mrf.mxu0
        %680 = vmatprep.mubr.bf16.mxu0 0
        %681 = vmatmul.mubr.bf16.gmra.mxu0 %v573
        %v682 = vpop.f32.mrf.mxu0
        %v683 = vadd.f32 0.0, %v682
        %v684 = vpop.f32.mrf.mxu0
        %v685 = vpop.f32.mrf.mxu0
        %v686 = vadd.f32 0.0, %v685
        %v687 = vpop.f32.mrf.mxu0
        %688 = vmatprep.mubr.bf16.mxu0 0
        %689 = vmatmul.mubr.bf16.gmra.mxu0 %v574
        %v690 = vpop.f32.mrf.mxu0
        %v691 = vadd.f32 0.0, %v690
        %v692 = vpop.f32.mrf.mxu0
        %v693 = vpop.f32.mrf.mxu0
        %v694 = vadd.f32 0.0, %v693
        %v695 = vpop.f32.mrf.mxu0
        %696 = vmatprep.mubr.bf16.mxu0 0
        %697 = vmatmul.mubr.bf16.gmra.mxu0 %v575
        %v698 = vpop.f32.mrf.mxu0
        %v699 = vadd.f32 0.0, %v698
        %v700 = vpop.f32.mrf.mxu0
        %v701 = vpop.f32.mrf.mxu0
        %v702 = vadd.f32 0.0, %v701
        %v703 = vpop.f32.mrf.mxu0
        %704 = vmatprep.mubr.bf16.mxu0 0
        %705 = vmatmul.mubr.bf16.gmra.mxu0 %v576
        %v706 = vpop.f32.mrf.mxu0
        %v707 = vadd.f32 0.0, %v706
        %v708 = vpop.f32.mrf.mxu0
        %v709 = vpop.f32.mrf.mxu0
        %v710 = vadd.f32 0.0, %v709
        %v711 = vpop.f32.mrf.mxu0
        %712 = vmatprep.mubr.bf16.mxu0 0
        %713 = vmatmul.mubr.bf16.gmra.mxu0 %v577
        %v714 = vpop.f32.mrf.mxu0
        %v715 = vadd.f32 0.0, %v714
        %v716 = vpop.f32.mrf.mxu0
        %v717 = vpop.f32.mrf.mxu0
        %v718 = vadd.f32 0.0, %v717
        %v719 = vpop.f32.mrf.mxu0
        %720 = vmatprep.mubr.bf16.mxu0 0
        %721 = vmatmul.mubr.bf16.gmra.mxu0 %v578
        %v722 = vpop.f32.mrf.mxu0
        %v723 = vadd.f32 0.0, %v722
        %v724 = vpop.f32.mrf.mxu0
        %v725 = vpop.f32.mrf.mxu0
        %v726 = vadd.f32 0.0, %v725
        %v727 = vpop.f32.mrf.mxu0
        %728 = vmatprep.mubr.bf16.mxu0 0
        %729 = vmatmul.mubr.bf16.gmra.mxu0 %v579
        %v730 = vpop.f32.mrf.mxu0
        %v731 = vadd.f32 0.0, %v730
        %v732 = vpop.f32.mrf.mxu0
        %v733 = vpop.f32.mrf.mxu0
        %v734 = vadd.f32 0.0, %v733
        %v735 = vpop.f32.mrf.mxu0
        %736 = vmatprep.mubr.bf16.mxu0 0
        %737 = vmatmul.mubr.bf16.gmra.mxu0 %v580
        %v738 = vpop.f32.mrf.mxu0
        %v739 = vadd.f32 0.0, %v738
        %v740 = vpop.f32.mrf.mxu0
        %v741 = vpop.f32.mrf.mxu0
        %v742 = vadd.f32 0.0, %v741
        %v743 = vpop.f32.mrf.mxu0
        %744 = vmatprep.mubr.bf16.mxu0 0
        %745 = vmatmul.mubr.bf16.gmra.mxu0 %v581
        %v746 = vpop.f32.mrf.mxu0
        %v747 = vadd.f32 0.0, %v746
        %v748 = vpop.f32.mrf.mxu0
        %v749 = vpop.f32.mrf.mxu0
        %v750 = vadd.f32 0.0, %v749
        %v751 = vpop.f32.mrf.mxu0
        %752 = vdwg.mxu0
        %v753 = vld [vmem:[%s2] sm:$0x1]
        %v755 = vlaneseq
        %v756 = vshrl.u32 %v755, 7
        %v757 = vsub.s32 0, %v756
        %v758 = vrot.slane %v753, %v757
        %v760 = vmul.f32 %v675, %v758
        %v761 = vmul.f32 %v678, %v758
        %v762 = vmul.f32 %v683, %v758
        %v763 = vmul.f32 %v686, %v758
        %v764 = vmul.f32 %v691, %v758
        %v765 = vmul.f32 %v694, %v758
        %v766 = vmul.f32 %v699, %v758
        %v767 = vmul.f32 %v702, %v758
        %v768 = vmul.f32 %v707, %v758
        %v769 = vmul.f32 %v710, %v758
        %v770 = vmul.f32 %v715, %v758
        %v771 = vmul.f32 %v718, %v758
        %v772 = vmul.f32 %v723, %v758
        %v773 = vmul.f32 %v726, %v758
        %v774 = vmul.f32 %v731, %v758
        %v775 = vmul.f32 %v734, %v758
        %v776 = vmul.f32 %v739, %v758
        %v777 = vmul.f32 %v742, %v758
        %v778 = vmul.f32 %v747, %v758
        %v779 = vmul.f32 %v750, %v758
        %v780 = vld [vmem:[%s3] sm:$0x1]
        %v782 = vlaneseq
        %v783 = vshrl.u32 %v782, 7
        %v784 = vsub.s32 0, %v783
        %v785 = vrot.slane %v780, %v784
        %v787 = vadd.f32 %v760, %v785
        %v788 = vadd.f32 %v761, %v785
        %v789 = vadd.f32 %v762, %v785
        %v790 = vadd.f32 %v763, %v785
        %v791 = vadd.f32 %v764, %v785
        %v792 = vadd.f32 %v765, %v785
        %v793 = vadd.f32 %v766, %v785
        %v794 = vadd.f32 %v767, %v785
        %v795 = vadd.f32 %v768, %v785
        %v796 = vadd.f32 %v769, %v785
        %v797 = vadd.f32 %v770, %v785
        %v798 = vadd.f32 %v771, %v785
        %v799 = vadd.f32 %v772, %v785
        %v800 = vadd.f32 %v773, %v785
        %v801 = vadd.f32 %v774, %v785
        %v802 = vadd.f32 %v775, %v785
        %v803 = vadd.f32 %v776, %v785
        %v804 = vadd.f32 %v777, %v785
        %v805 = vadd.f32 %v778, %v785
        %v806 = vadd.f32 %v779, %v785
        %vm807 = vcmp.gt.f32.partialorder %v787, 0.0
        %vm808 = vcmp.gt.f32.partialorder %v788, 0.0
        %vm809 = vcmp.gt.f32.partialorder %v789, 0.0
        %vm810 = vcmp.gt.f32.partialorder %v790, 0.0
        %vm811 = vcmp.gt.f32.partialorder %v791, 0.0
        %vm812 = vcmp.gt.f32.partialorder %v792, 0.0
        %vm813 = vcmp.gt.f32.partialorder %v793, 0.0
        %vm814 = vcmp.gt.f32.partialorder %v794, 0.0
        %vm815 = vcmp.gt.f32.partialorder %v795, 0.0
        %vm816 = vcmp.gt.f32.partialorder %v796, 0.0
        %vm817 = vcmp.gt.f32.partialorder %v797, 0.0
        %vm818 = vcmp.gt.f32.partialorder %v798, 0.0
        %vm819 = vcmp.gt.f32.partialorder %v799, 0.0
        %vm820 = vcmp.gt.f32.partialorder %v800, 0.0
        %vm821 = vcmp.gt.f32.partialorder %v801, 0.0
        %vm822 = vcmp.gt.f32.partialorder %v802, 0.0
        %vm823 = vcmp.gt.f32.partialorder %v803, 0.0
        %vm824 = vcmp.gt.f32.partialorder %v804, 0.0
        %vm825 = vcmp.gt.f32.partialorder %v805, 0.0
        %vm826 = vcmp.gt.f32.partialorder %v806, 0.0
        %v827 = vld [vmem:[%s4] sm:$0x1]
        %v829 = vlaneseq
        %v830 = vshrl.u32 %v829, 7
        %v831 = vsub.s32 0, %v830
        %v832 = vrot.slane %v827, %v831
        %v834 = vmul.f32 %v832, %v787
        %v835 = vmul.f32 %v832, %v788
        %v836 = vmul.f32 %v832, %v789
        %v837 = vmul.f32 %v832, %v790
        %v838 = vmul.f32 %v832, %v791
        %v839 = vmul.f32 %v832, %v792
        %v840 = vmul.f32 %v832, %v793
        %v841 = vmul.f32 %v832, %v794
        %v842 = vmul.f32 %v832, %v795
        %v843 = vmul.f32 %v832, %v796
        %v844 = vmul.f32 %v832, %v797
        %v845 = vmul.f32 %v832, %v798
        %v846 = vmul.f32 %v832, %v799
        %v847 = vmul.f32 %v832, %v800
        %v848 = vmul.f32 %v832, %v801
        %v849 = vmul.f32 %v832, %v802
        %v850 = vmul.f32 %v832, %v803
        %v851 = vmul.f32 %v832, %v804
        %v852 = vmul.f32 %v832, %v805
        %v853 = vmul.f32 %v832, %v806
        %v854 = vsel %vm807, %v787, %v834
        %v855 = vsel %vm808, %v788, %v835
        %v856 = vsel %vm809, %v789, %v836
        %v857 = vsel %vm810, %v790, %v837
        %v858 = vsel %vm811, %v791, %v838
        %v859 = vsel %vm812, %v792, %v839
        %v860 = vsel %vm813, %v793, %v840
        %v861 = vsel %vm814, %v794, %v841
        %v862 = vsel %vm815, %v795, %v842
        %v863 = vsel %vm816, %v796, %v843
        %v864 = vsel %vm817, %v797, %v844
        %v865 = vsel %vm818, %v798, %v845
        %v866 = vsel %vm819, %v799, %v846
        %v867 = vsel %vm820, %v800, %v847
        %v868 = vsel %vm821, %v801, %v848
        %v869 = vsel %vm822, %v802, %v849
        %v870 = vsel %vm823, %v803, %v850
        %v871 = vsel %vm824, %v804, %v851
        %v872 = vsel %vm825, %v805, %v852
        %v873 = vsel %vm826, %v806, %v853
        %874 = vst [vmem:[#allocation2] sm:$0x1] 0.0
        %875 = vst [vmem:[#allocation2 + $0x18] sm:$0x1] 0.0
        %876 = vst [vmem:[#allocation2 + $0x30] sm:$0x1] 0.0
        %877 = vst [vmem:[#allocation2 + $0x48] sm:$0x1] 0.0
        %878 = vst [vmem:[#allocation2 + $0x60] sm:$0x1] 0.0
        %879 = vst [vmem:[#allocation2 + $0x78] sm:$0x1] 0.0
        %880 = vst [vmem:[#allocation2 + $0x90] sm:$0x1] 0.0
        %881 = vst [vmem:[#allocation2 + $0xa8] sm:$0x1] 0.0
        %882 = vst [vmem:[#allocation2 + $0xc0] sm:$0x1] 0.0
        %883 = vst [vmem:[#allocation2 + $0xd8] sm:$0x1] 0.0
        %884 = vst [vmem:[#allocation2 + $0x11] sm:$0x7f] 0.0
        %885 = vst [vmem:[#allocation2 + $0x29] sm:$0x7f] 0.0
        %886 = vst [vmem:[#allocation2 + $0x41] sm:$0x7f] 0.0
        %887 = vst [vmem:[#allocation2 + $0x59] sm:$0x7f] 0.0
        %888 = vst [vmem:[#allocation2 + $0x71] sm:$0x7f] 0.0
        %889 = vst [vmem:[#allocation2 + $0x89] sm:$0x7f] 0.0
        %890 = vst [vmem:[#allocation2 + $0xa1] sm:$0x7f] 0.0
        %891 = vst [vmem:[#allocation2 + $0xb9] sm:$0x7f] 0.0
        %892 = vst [vmem:[#allocation2 + $0xd1] sm:$0x7f] 0.0
        %893 = vst [vmem:[#allocation2 + $0xe9] sm:$0x7f] 0.0
        %894 = vst [vmem:[#allocation2 + $0x1] sm:$0xff] %v854
        %895 = vst [vmem:[#allocation2 + $0x9] sm:$0xff] %v855
        %896 = vst [vmem:[#allocation2 + $0x19] sm:$0xff] %v856
        %897 = vst [vmem:[#allocation2 + $0x21] sm:$0xff] %v857
        %898 = vst [vmem:[#allocation2 + $0x31] sm:$0xff] %v858
        %899 = vst [vmem:[#allocation2 + $0x39] sm:$0xff] %v859
        %900 = vst [vmem:[#allocation2 + $0x49] sm:$0xff] %v860
        %901 = vst [vmem:[#allocation2 + $0x51] sm:$0xff] %v861
        %902 = vst [vmem:[#allocation2 + $0x61] sm:$0xff] %v862
        %903 = vst [vmem:[#allocation2 + $0x69] sm:$0xff] %v863
        %904 = vst [vmem:[#allocation2 + $0x79] sm:$0xff] %v864
        %905 = vst [vmem:[#allocation2 + $0x81] sm:$0xff] %v865
        %906 = vst [vmem:[#allocation2 + $0x91] sm:$0xff] %v866
        %907 = vst [vmem:[#allocation2 + $0x99] sm:$0xff] %v867
        %908 = vst [vmem:[#allocation2 + $0xa9] sm:$0xff] %v868
        %909 = vst [vmem:[#allocation2 + $0xb1] sm:$0xff] %v869
        %910 = vst [vmem:[#allocation2 + $0xc1] sm:$0xff] %v870
        %911 = vst [vmem:[#allocation2 + $0xc9] sm:$0xff] %v871
        %912 = vst [vmem:[#allocation2 + $0xd9] sm:$0xff] %v872
        %913 = vst [vmem:[#allocation2 + $0xe1] sm:$0xff] %v873
        %p914 = scmp.eq.s32.totalorder %s36, 0
        // Predicated region
        $region85: #{tpu_custom_call.1} parent=67 // pred_check
          %p915 = pneg %p914
        $region86: #{tpu_custom_call.1} parent=67 // pred_check_branch
          %917 = sbr.rel (%p915) target = $region88
        $region87: #{tpu_custom_call.1} parent=67 // pred_region
          %918 = vst [vmem:[#allocation2 + $0x1] sm:$0xff] 0.0
          %919 = vst [vmem:[#allocation2 + $0x9] sm:$0xff] 0.0
        $region88: #{tpu_custom_call.1} parent=67 // pred_fallthru
          _
        %p920 = scmp.eq.s32.totalorder %s36, 1
        // Predicated region
        $region89: #{tpu_custom_call.1} parent=67 // pred_check
          %p921 = pneg %p920
        $region90: #{tpu_custom_call.1} parent=67 // pred_check_branch
          %923 = sbr.rel (%p921) target = $region92
        $region91: #{tpu_custom_call.1} parent=67 // pred_region
          %s924 = scalar_lea.vmem [#allocation2], 216
          %925 = vst [vmem:[%s924 + $0x1] sm:$0xff] 0.0
          %926 = vst [vmem:[%s924 + $0x9] sm:$0xff] 0.0
        $region92: #{tpu_custom_call.1} parent=67 // pred_fallthru
          _
        %v927 = vld [vmem:[#allocation8] sm:$0x1]
        %v928 = vld [vmem:[#allocation2] sm:$0xff]
        %v929 = vld [vmem:[#allocation2 + $0x8] sm:$0xff]
        %v930 = vld [vmem:[#allocation2 + $0x18] sm:$0xff]
        %v931 = vld [vmem:[#allocation2 + $0x20] sm:$0xff]
        %v932 = vld [vmem:[#allocation2 + $0x30] sm:$0xff]
        %v933 = vld [vmem:[#allocation2 + $0x38] sm:$0xff]
        %v934 = vld [vmem:[#allocation2 + $0x48] sm:$0xff]
        %v935 = vld [vmem:[#allocation2 + $0x50] sm:$0xff]
        %v936 = vld [vmem:[#allocation2 + $0x60] sm:$0xff]
        %v937 = vld [vmem:[#allocation2 + $0x68] sm:$0xff]
        %v938 = vld [vmem:[#allocation2 + $0x78] sm:$0xff]
        %v939 = vld [vmem:[#allocation2 + $0x80] sm:$0xff]
        %v940 = vld [vmem:[#allocation2 + $0x90] sm:$0xff]
        %v941 = vld [vmem:[#allocation2 + $0x98] sm:$0xff]
        %v942 = vld [vmem:[#allocation2 + $0xa8] sm:$0xff]
        %v943 = vld [vmem:[#allocation2 + $0xb0] sm:$0xff]
        %v944 = vlaneseq
        %v945 = vshrl.u32 %v944, 7
        %v946 = vsub.s32 0, %v945
        %v947 = vrot.slane %v927, %v946
        %v948 = vmul.f32 %v928, %v947
        %v949 = vmul.f32 %v929, %v947
        %v950 = vmul.f32 %v930, %v947
        %v951 = vmul.f32 %v931, %v947
        %v952 = vmul.f32 %v932, %v947
        %v953 = vmul.f32 %v933, %v947
        %v954 = vmul.f32 %v934, %v947
        %v955 = vmul.f32 %v935, %v947
        %v956 = vmul.f32 %v936, %v947
        %v957 = vmul.f32 %v937, %v947
        %v958 = vmul.f32 %v938, %v947
        %v959 = vmul.f32 %v939, %v947
        %v960 = vmul.f32 %v940, %v947
        %v961 = vmul.f32 %v941, %v947
        %v962 = vmul.f32 %v942, %v947
        %v963 = vmul.f32 %v943, %v947
        %v964 = vadd.f32 %v948, 0.0
        %v965 = vadd.f32 %v949, 0.0
        %v966 = vadd.f32 %v950, 0.0
        %v967 = vadd.f32 %v951, 0.0
        %v968 = vadd.f32 %v952, 0.0
        %v969 = vadd.f32 %v953, 0.0
        %v970 = vadd.f32 %v954, 0.0
        %v971 = vadd.f32 %v955, 0.0
        %v972 = vadd.f32 %v956, 0.0
        %v973 = vadd.f32 %v957, 0.0
        %v974 = vadd.f32 %v958, 0.0
        %v975 = vadd.f32 %v959, 0.0
        %v976 = vadd.f32 %v960, 0.0
        %v977 = vadd.f32 %v961, 0.0
        %v978 = vadd.f32 %v962, 0.0
        %v979 = vadd.f32 %v963, 0.0
        %v980 = vld [vmem:[#allocation8 + $0x1] sm:$0x1]
        %v981 = vld [vmem:[#allocation2 + $0x1] sm:$0xff]
        %v982 = vld [vmem:[#allocation2 + $0x9] sm:$0xff]
        %v983 = vld [vmem:[#allocation2 + $0x19] sm:$0xff]
        %v984 = vld [vmem:[#allocation2 + $0x21] sm:$0xff]
        %v985 = vld [vmem:[#allocation2 + $0x31] sm:$0xff]
        %v986 = vld [vmem:[#allocation2 + $0x39] sm:$0xff]
        %v987 = vld [vmem:[#allocation2 + $0x49] sm:$0xff]
        %v988 = vld [vmem:[#allocation2 + $0x51] sm:$0xff]
        %v989 = vld [vmem:[#allocation2 + $0x61] sm:$0xff]
        %v990 = vld [vmem:[#allocation2 + $0x69] sm:$0xff]
        %v991 = vld [vmem:[#allocation2 + $0x79] sm:$0xff]
        %v992 = vld [vmem:[#allocation2 + $0x81] sm:$0xff]
        %v993 = vld [vmem:[#allocation2 + $0x91] sm:$0xff]
        %v994 = vld [vmem:[#allocation2 + $0x99] sm:$0xff]
        %v995 = vld [vmem:[#allocation2 + $0xa9] sm:$0xff]
        %v996 = vld [vmem:[#allocation2 + $0xb1] sm:$0xff]
        %v997 = vlaneseq
        %v998 = vshrl.u32 %v997, 7
        %v999 = vsub.s32 0, %v998
        %v1000 = vrot.slane %v980, %v999
        %v1001 = vmul.f32 %v981, %v1000
        %v1002 = vmul.f32 %v982, %v1000
        %v1003 = vmul.f32 %v983, %v1000
        %v1004 = vmul.f32 %v984, %v1000
        %v1005 = vmul.f32 %v985, %v1000
        %v1006 = vmul.f32 %v986, %v1000
        %v1007 = vmul.f32 %v987, %v1000
        %v1008 = vmul.f32 %v988, %v1000
        %v1009 = vmul.f32 %v989, %v1000
        %v1010 = vmul.f32 %v990, %v1000
        %v1011 = vmul.f32 %v991, %v1000
        %v1012 = vmul.f32 %v992, %v1000
        %v1013 = vmul.f32 %v993, %v1000
        %v1014 = vmul.f32 %v994, %v1000
        %v1015 = vmul.f32 %v995, %v1000
        %v1016 = vmul.f32 %v996, %v1000
        %v1017 = vadd.f32 %v964, %v1001
        %v1018 = vadd.f32 %v965, %v1002
        %v1019 = vadd.f32 %v966, %v1003
        %v1020 = vadd.f32 %v967, %v1004
        %v1021 = vadd.f32 %v968, %v1005
        %v1022 = vadd.f32 %v969, %v1006
        %v1023 = vadd.f32 %v970, %v1007
        %v1024 = vadd.f32 %v971, %v1008
        %v1025 = vadd.f32 %v972, %v1009
        %v1026 = vadd.f32 %v973, %v1010
        %v1027 = vadd.f32 %v974, %v1011
        %v1028 = vadd.f32 %v975, %v1012
        %v1029 = vadd.f32 %v976, %v1013
        %v1030 = vadd.f32 %v977, %v1014
        %v1031 = vadd.f32 %v978, %v1015
        %v1032 = vadd.f32 %v979, %v1016
        %v1033 = vld [vmem:[#allocation8 + $0x2] sm:$0x1]
        %v1034 = vld [vmem:[#allocation2 + $0x2] sm:$0xff]
        %v1035 = vld [vmem:[#allocation2 + $0xa] sm:$0xff]
        %v1036 = vld [vmem:[#allocation2 + $0x1a] sm:$0xff]
        %v1037 = vld [vmem:[#allocation2 + $0x22] sm:$0xff]
        %v1038 = vld [vmem:[#allocation2 + $0x32] sm:$0xff]
        %v1039 = vld [vmem:[#allocation2 + $0x3a] sm:$0xff]
        %v1040 = vld [vmem:[#allocation2 + $0x4a] sm:$0xff]
        %v1041 = vld [vmem:[#allocation2 + $0x52] sm:$0xff]
        %v1042 = vld [vmem:[#allocation2 + $0x62] sm:$0xff]
        %v1043 = vld [vmem:[#allocation2 + $0x6a] sm:$0xff]
        %v1044 = vld [vmem:[#allocation2 + $0x7a] sm:$0xff]
        %v1045 = vld [vmem:[#allocation2 + $0x82] sm:$0xff]
        %v1046 = vld [vmem:[#allocation2 + $0x92] sm:$0xff]
        %v1047 = vld [vmem:[#allocation2 + $0x9a] sm:$0xff]
        %v1048 = vld [vmem:[#allocation2 + $0xaa] sm:$0xff]
        %v1049 = vld [vmem:[#allocation2 + $0xb2] sm:$0xff]
        %v1050 = vlaneseq
        %v1051 = vshrl.u32 %v1050, 7
        %v1052 = vsub.s32 0, %v1051
        %v1053 = vrot.slane %v1033, %v1052
        %v1054 = vmul.f32 %v1034, %v1053
        %v1055 = vmul.f32 %v1035, %v1053
        %v1056 = vmul.f32 %v1036, %v1053
        %v1057 = vmul.f32 %v1037, %v1053
        %v1058 = vmul.f32 %v1038, %v1053
        %v1059 = vmul.f32 %v1039, %v1053
        %v1060 = vmul.f32 %v1040, %v1053
        %v1061 = vmul.f32 %v1041, %v1053
        %v1062 = vmul.f32 %v1042, %v1053
        %v1063 = vmul.f32 %v1043, %v1053
        %v1064 = vmul.f32 %v1044, %v1053
        %v1065 = vmul.f32 %v1045, %v1053
        %v1066 = vmul.f32 %v1046, %v1053
        %v1067 = vmul.f32 %v1047, %v1053
        %v1068 = vmul.f32 %v1048, %v1053
        %v1069 = vmul.f32 %v1049, %v1053
        %v1070 = vadd.f32 %v1017, %v1054
        %v1071 = vadd.f32 %v1018, %v1055
        %v1072 = vadd.f32 %v1019, %v1056
        %v1073 = vadd.f32 %v1020, %v1057
        %v1074 = vadd.f32 %v1021, %v1058
        %v1075 = vadd.f32 %v1022, %v1059
        %v1076 = vadd.f32 %v1023, %v1060
        %v1077 = vadd.f32 %v1024, %v1061
        %v1078 = vadd.f32 %v1025, %v1062
        %v1079 = vadd.f32 %v1026, %v1063
        %v1080 = vadd.f32 %v1027, %v1064
        %v1081 = vadd.f32 %v1028, %v1065
        %v1082 = vadd.f32 %v1029, %v1066
        %v1083 = vadd.f32 %v1030, %v1067
        %v1084 = vadd.f32 %v1031, %v1068
        %v1085 = vadd.f32 %v1032, %v1069
        %v1086 = vld [vmem:[#allocation8 + $0x3] sm:$0x1]
        %s1087 = scalar_lea.vmem [#allocation2], 24
        %v1088 = vld [vmem:[%s1087] sm:$0xff]
        %v1089 = vld [vmem:[%s1087 + $0x8] sm:$0xff]
        %v1090 = vld [vmem:[%s1087 + $0x18] sm:$0xff]
        %v1091 = vld [vmem:[%s1087 + $0x20] sm:$0xff]
        %v1092 = vld [vmem:[%s1087 + $0x30] sm:$0xff]
        %v1093 = vld [vmem:[%s1087 + $0x38] sm:$0xff]
        %v1094 = vld [vmem:[%s1087 + $0x48] sm:$0xff]
        %v1095 = vld [vmem:[%s1087 + $0x50] sm:$0xff]
        %v1096 = vld [vmem:[%s1087 + $0x60] sm:$0xff]
        %v1097 = vld [vmem:[%s1087 + $0x68] sm:$0xff]
        %v1098 = vld [vmem:[%s1087 + $0x78] sm:$0xff]
        %v1099 = vld [vmem:[%s1087 + $0x80] sm:$0xff]
        %v1100 = vld [vmem:[%s1087 + $0x90] sm:$0xff]
        %v1101 = vld [vmem:[%s1087 + $0x98] sm:$0xff]
        %v1102 = vld [vmem:[%s1087 + $0xa8] sm:$0xff]
        %v1103 = vld [vmem:[%s1087 + $0xb0] sm:$0xff]
        %v1104 = vlaneseq
        %v1105 = vshrl.u32 %v1104, 7
        %v1106 = vsub.s32 0, %v1105
        %v1107 = vrot.slane %v1086, %v1106
        %v1108 = vmul.f32 %v1088, %v1107
        %v1109 = vmul.f32 %v1089, %v1107
        %v1110 = vmul.f32 %v1090, %v1107
        %v1111 = vmul.f32 %v1091, %v1107
        %v1112 = vmul.f32 %v1092, %v1107
        %v1113 = vmul.f32 %v1093, %v1107
        %v1114 = vmul.f32 %v1094, %v1107
        %v1115 = vmul.f32 %v1095, %v1107
        %v1116 = vmul.f32 %v1096, %v1107
        %v1117 = vmul.f32 %v1097, %v1107
        %v1118 = vmul.f32 %v1098, %v1107
        %v1119 = vmul.f32 %v1099, %v1107
        %v1120 = vmul.f32 %v1100, %v1107
        %v1121 = vmul.f32 %v1101, %v1107
        %v1122 = vmul.f32 %v1102, %v1107
        %v1123 = vmul.f32 %v1103, %v1107
        %v1124 = vadd.f32 %v1070, %v1108
        %v1125 = vadd.f32 %v1071, %v1109
        %v1126 = vadd.f32 %v1072, %v1110
        %v1127 = vadd.f32 %v1073, %v1111
        %v1128 = vadd.f32 %v1074, %v1112
        %v1129 = vadd.f32 %v1075, %v1113
        %v1130 = vadd.f32 %v1076, %v1114
        %v1131 = vadd.f32 %v1077, %v1115
        %v1132 = vadd.f32 %v1078, %v1116
        %v1133 = vadd.f32 %v1079, %v1117
        %v1134 = vadd.f32 %v1080, %v1118
        %v1135 = vadd.f32 %v1081, %v1119
        %v1136 = vadd.f32 %v1082, %v1120
        %v1137 = vadd.f32 %v1083, %v1121
        %v1138 = vadd.f32 %v1084, %v1122
        %v1139 = vadd.f32 %v1085, %v1123
        %v1140 = vld [vmem:[#allocation8 + $0x4] sm:$0x1]
        %v1141 = vld [vmem:[%s1087 + $0x1] sm:$0xff]
        %v1142 = vld [vmem:[%s1087 + $0x9] sm:$0xff]
        %v1143 = vld [vmem:[%s1087 + $0x19] sm:$0xff]
        %v1144 = vld [vmem:[%s1087 + $0x21] sm:$0xff]
        %v1145 = vld [vmem:[%s1087 + $0x31] sm:$0xff]
        %v1146 = vld [vmem:[%s1087 + $0x39] sm:$0xff]
        %v1147 = vld [vmem:[%s1087 + $0x49] sm:$0xff]
        %v1148 = vld [vmem:[%s1087 + $0x51] sm:$0xff]
        %v1149 = vld [vmem:[%s1087 + $0x61] sm:$0xff]
        %v1150 = vld [vmem:[%s1087 + $0x69] sm:$0xff]
        %v1151 = vld [vmem:[%s1087 + $0x79] sm:$0xff]
        %v1152 = vld [vmem:[%s1087 + $0x81] sm:$0xff]
        %v1153 = vld [vmem:[%s1087 + $0x91] sm:$0xff]
        %v1154 = vld [vmem:[%s1087 + $0x99] sm:$0xff]
        %v1155 = vld [vmem:[%s1087 + $0xa9] sm:$0xff]
        %v1156 = vld [vmem:[%s1087 + $0xb1] sm:$0xff]
        %v1157 = vlaneseq
        %v1158 = vshrl.u32 %v1157, 7
        %v1159 = vsub.s32 0, %v1158
        %v1160 = vrot.slane %v1140, %v1159
        %v1161 = vmul.f32 %v1141, %v1160
        %v1162 = vmul.f32 %v1142, %v1160
        %v1163 = vmul.f32 %v1143, %v1160
        %v1164 = vmul.f32 %v1144, %v1160
        %v1165 = vmul.f32 %v1145, %v1160
        %v1166 = vmul.f32 %v1146, %v1160
        %v1167 = vmul.f32 %v1147, %v1160
        %v1168 = vmul.f32 %v1148, %v1160
        %v1169 = vmul.f32 %v1149, %v1160
        %v1170 = vmul.f32 %v1150, %v1160
        %v1171 = vmul.f32 %v1151, %v1160
        %v1172 = vmul.f32 %v1152, %v1160
        %v1173 = vmul.f32 %v1153, %v1160
        %v1174 = vmul.f32 %v1154, %v1160
        %v1175 = vmul.f32 %v1155, %v1160
        %v1176 = vmul.f32 %v1156, %v1160
        %v1177 = vadd.f32 %v1124, %v1161
        %v1178 = vadd.f32 %v1125, %v1162
        %v1179 = vadd.f32 %v1126, %v1163
        %v1180 = vadd.f32 %v1127, %v1164
        %v1181 = vadd.f32 %v1128, %v1165
        %v1182 = vadd.f32 %v1129, %v1166
        %v1183 = vadd.f32 %v1130, %v1167
        %v1184 = vadd.f32 %v1131, %v1168
        %v1185 = vadd.f32 %v1132, %v1169
        %v1186 = vadd.f32 %v1133, %v1170
        %v1187 = vadd.f32 %v1134, %v1171
        %v1188 = vadd.f32 %v1135, %v1172
        %v1189 = vadd.f32 %v1136, %v1173
        %v1190 = vadd.f32 %v1137, %v1174
        %v1191 = vadd.f32 %v1138, %v1175
        %v1192 = vadd.f32 %v1139, %v1176
        %v1193 = vld [vmem:[#allocation8 + $0x5] sm:$0x1]
        %v1194 = vld [vmem:[%s1087 + $0x2] sm:$0xff]
        %v1195 = vld [vmem:[%s1087 + $0xa] sm:$0xff]
        %v1196 = vld [vmem:[%s1087 + $0x1a] sm:$0xff]
        %v1197 = vld [vmem:[%s1087 + $0x22] sm:$0xff]
        %v1198 = vld [vmem:[%s1087 + $0x32] sm:$0xff]
        %v1199 = vld [vmem:[%s1087 + $0x3a] sm:$0xff]
        %v1200 = vld [vmem:[%s1087 + $0x4a] sm:$0xff]
        %v1201 = vld [vmem:[%s1087 + $0x52] sm:$0xff]
        %v1202 = vld [vmem:[%s1087 + $0x62] sm:$0xff]
        %v1203 = vld [vmem:[%s1087 + $0x6a] sm:$0xff]
        %v1204 = vld [vmem:[%s1087 + $0x7a] sm:$0xff]
        %v1205 = vld [vmem:[%s1087 + $0x82] sm:$0xff]
        %v1206 = vld [vmem:[%s1087 + $0x92] sm:$0xff]
        %v1207 = vld [vmem:[%s1087 + $0x9a] sm:$0xff]
        %v1208 = vld [vmem:[%s1087 + $0xaa] sm:$0xff]
        %v1209 = vld [vmem:[%s1087 + $0xb2] sm:$0xff]
        %v1210 = vlaneseq
        %v1211 = vshrl.u32 %v1210, 7
        %v1212 = vsub.s32 0, %v1211
        %v1213 = vrot.slane %v1193, %v1212
        %v1214 = vmul.f32 %v1194, %v1213
        %v1215 = vmul.f32 %v1195, %v1213
        %v1216 = vmul.f32 %v1196, %v1213
        %v1217 = vmul.f32 %v1197, %v1213
        %v1218 = vmul.f32 %v1198, %v1213
        %v1219 = vmul.f32 %v1199, %v1213
        %v1220 = vmul.f32 %v1200, %v1213
        %v1221 = vmul.f32 %v1201, %v1213
        %v1222 = vmul.f32 %v1202, %v1213
        %v1223 = vmul.f32 %v1203, %v1213
        %v1224 = vmul.f32 %v1204, %v1213
        %v1225 = vmul.f32 %v1205, %v1213
        %v1226 = vmul.f32 %v1206, %v1213
        %v1227 = vmul.f32 %v1207, %v1213
        %v1228 = vmul.f32 %v1208, %v1213
        %v1229 = vmul.f32 %v1209, %v1213
        %v1230 = vadd.f32 %v1177, %v1214
        %v1231 = vadd.f32 %v1178, %v1215
        %v1232 = vadd.f32 %v1179, %v1216
        %v1233 = vadd.f32 %v1180, %v1217
        %v1234 = vadd.f32 %v1181, %v1218
        %v1235 = vadd.f32 %v1182, %v1219
        %v1236 = vadd.f32 %v1183, %v1220
        %v1237 = vadd.f32 %v1184, %v1221
        %v1238 = vadd.f32 %v1185, %v1222
        %v1239 = vadd.f32 %v1186, %v1223
        %v1240 = vadd.f32 %v1187, %v1224
        %v1241 = vadd.f32 %v1188, %v1225
        %v1242 = vadd.f32 %v1189, %v1226
        %v1243 = vadd.f32 %v1190, %v1227
        %v1244 = vadd.f32 %v1191, %v1228
        %v1245 = vadd.f32 %v1192, %v1229
        %v1246 = vld [vmem:[#allocation8 + $0x6] sm:$0x1]
        %s1247 = scalar_lea.vmem [#allocation2], 48
        %v1248 = vld [vmem:[%s1247] sm:$0xff]
        %v1249 = vld [vmem:[%s1247 + $0x8] sm:$0xff]
        %v1250 = vld [vmem:[%s1247 + $0x18] sm:$0xff]
        %v1251 = vld [vmem:[%s1247 + $0x20] sm:$0xff]
        %v1252 = vld [vmem:[%s1247 + $0x30] sm:$0xff]
        %v1253 = vld [vmem:[%s1247 + $0x38] sm:$0xff]
        %v1254 = vld [vmem:[%s1247 + $0x48] sm:$0xff]
        %v1255 = vld [vmem:[%s1247 + $0x50] sm:$0xff]
        %v1256 = vld [vmem:[%s1247 + $0x60] sm:$0xff]
        %v1257 = vld [vmem:[%s1247 + $0x68] sm:$0xff]
        %v1258 = vld [vmem:[%s1247 + $0x78] sm:$0xff]
        %v1259 = vld [vmem:[%s1247 + $0x80] sm:$0xff]
        %v1260 = vld [vmem:[%s1247 + $0x90] sm:$0xff]
        %v1261 = vld [vmem:[%s1247 + $0x98] sm:$0xff]
        %v1262 = vld [vmem:[%s1247 + $0xa8] sm:$0xff]
        %v1263 = vld [vmem:[%s1247 + $0xb0] sm:$0xff]
        %v1264 = vlaneseq
        %v1265 = vshrl.u32 %v1264, 7
        %v1266 = vsub.s32 0, %v1265
        %v1267 = vrot.slane %v1246, %v1266
        %v1268 = vmul.f32 %v1248, %v1267
        %v1269 = vmul.f32 %v1249, %v1267
        %v1270 = vmul.f32 %v1250, %v1267
        %v1271 = vmul.f32 %v1251, %v1267
        %v1272 = vmul.f32 %v1252, %v1267
        %v1273 = vmul.f32 %v1253, %v1267
        %v1274 = vmul.f32 %v1254, %v1267
        %v1275 = vmul.f32 %v1255, %v1267
        %v1276 = vmul.f32 %v1256, %v1267
        %v1277 = vmul.f32 %v1257, %v1267
        %v1278 = vmul.f32 %v1258, %v1267
        %v1279 = vmul.f32 %v1259, %v1267
        %v1280 = vmul.f32 %v1260, %v1267
        %v1281 = vmul.f32 %v1261, %v1267
        %v1282 = vmul.f32 %v1262, %v1267
        %v1283 = vmul.f32 %v1263, %v1267
        %v1284 = vadd.f32 %v1230, %v1268
        %v1285 = vadd.f32 %v1231, %v1269
        %v1286 = vadd.f32 %v1232, %v1270
        %v1287 = vadd.f32 %v1233, %v1271
        %v1288 = vadd.f32 %v1234, %v1272
        %v1289 = vadd.f32 %v1235, %v1273
        %v1290 = vadd.f32 %v1236, %v1274
        %v1291 = vadd.f32 %v1237, %v1275
        %v1292 = vadd.f32 %v1238, %v1276
        %v1293 = vadd.f32 %v1239, %v1277
        %v1294 = vadd.f32 %v1240, %v1278
        %v1295 = vadd.f32 %v1241, %v1279
        %v1296 = vadd.f32 %v1242, %v1280
        %v1297 = vadd.f32 %v1243, %v1281
        %v1298 = vadd.f32 %v1244, %v1282
        %v1299 = vadd.f32 %v1245, %v1283
        %v1300 = vld [vmem:[#allocation8 + $0x7] sm:$0x1]
        %v1301 = vld [vmem:[%s1247 + $0x1] sm:$0xff]
        %v1302 = vld [vmem:[%s1247 + $0x9] sm:$0xff]
        %v1303 = vld [vmem:[%s1247 + $0x19] sm:$0xff]
        %v1304 = vld [vmem:[%s1247 + $0x21] sm:$0xff]
        %v1305 = vld [vmem:[%s1247 + $0x31] sm:$0xff]
        %v1306 = vld [vmem:[%s1247 + $0x39] sm:$0xff]
        %v1307 = vld [vmem:[%s1247 + $0x49] sm:$0xff]
        %v1308 = vld [vmem:[%s1247 + $0x51] sm:$0xff]
        %v1309 = vld [vmem:[%s1247 + $0x61] sm:$0xff]
        %v1310 = vld [vmem:[%s1247 + $0x69] sm:$0xff]
        %v1311 = vld [vmem:[%s1247 + $0x79] sm:$0xff]
        %v1312 = vld [vmem:[%s1247 + $0x81] sm:$0xff]
        %v1313 = vld [vmem:[%s1247 + $0x91] sm:$0xff]
        %v1314 = vld [vmem:[%s1247 + $0x99] sm:$0xff]
        %v1315 = vld [vmem:[%s1247 + $0xa9] sm:$0xff]
        %v1316 = vld [vmem:[%s1247 + $0xb1] sm:$0xff]
        %v1317 = vlaneseq
        %v1318 = vshrl.u32 %v1317, 7
        %v1319 = vsub.s32 0, %v1318
        %v1320 = vrot.slane %v1300, %v1319
        %v1321 = vmul.f32 %v1301, %v1320
        %v1322 = vmul.f32 %v1302, %v1320
        %v1323 = vmul.f32 %v1303, %v1320
        %v1324 = vmul.f32 %v1304, %v1320
        %v1325 = vmul.f32 %v1305, %v1320
        %v1326 = vmul.f32 %v1306, %v1320
        %v1327 = vmul.f32 %v1307, %v1320
        %v1328 = vmul.f32 %v1308, %v1320
        %v1329 = vmul.f32 %v1309, %v1320
        %v1330 = vmul.f32 %v1310, %v1320
        %v1331 = vmul.f32 %v1311, %v1320
        %v1332 = vmul.f32 %v1312, %v1320
        %v1333 = vmul.f32 %v1313, %v1320
        %v1334 = vmul.f32 %v1314, %v1320
        %v1335 = vmul.f32 %v1315, %v1320
        %v1336 = vmul.f32 %v1316, %v1320
        %v1337 = vadd.f32 %v1284, %v1321
        %v1338 = vadd.f32 %v1285, %v1322
        %v1339 = vadd.f32 %v1286, %v1323
        %v1340 = vadd.f32 %v1287, %v1324
        %v1341 = vadd.f32 %v1288, %v1325
        %v1342 = vadd.f32 %v1289, %v1326
        %v1343 = vadd.f32 %v1290, %v1327
        %v1344 = vadd.f32 %v1291, %v1328
        %v1345 = vadd.f32 %v1292, %v1329
        %v1346 = vadd.f32 %v1293, %v1330
        %v1347 = vadd.f32 %v1294, %v1331
        %v1348 = vadd.f32 %v1295, %v1332
        %v1349 = vadd.f32 %v1296, %v1333
        %v1350 = vadd.f32 %v1297, %v1334
        %v1351 = vadd.f32 %v1298, %v1335
        %v1352 = vadd.f32 %v1299, %v1336
        %v1353 = vld [vmem:[#allocation8 + $0x8] sm:$0x1]
        %v1354 = vld [vmem:[%s1247 + $0x2] sm:$0xff]
        %v1355 = vld [vmem:[%s1247 + $0xa] sm:$0xff]
        %v1356 = vld [vmem:[%s1247 + $0x1a] sm:$0xff]
        %v1357 = vld [vmem:[%s1247 + $0x22] sm:$0xff]
        %v1358 = vld [vmem:[%s1247 + $0x32] sm:$0xff]
        %v1359 = vld [vmem:[%s1247 + $0x3a] sm:$0xff]
        %v1360 = vld [vmem:[%s1247 + $0x4a] sm:$0xff]
        %v1361 = vld [vmem:[%s1247 + $0x52] sm:$0xff]
        %v1362 = vld [vmem:[%s1247 + $0x62] sm:$0xff]
        %v1363 = vld [vmem:[%s1247 + $0x6a] sm:$0xff]
        %v1364 = vld [vmem:[%s1247 + $0x7a] sm:$0xff]
        %v1365 = vld [vmem:[%s1247 + $0x82] sm:$0xff]
        %v1366 = vld [vmem:[%s1247 + $0x92] sm:$0xff]
        %v1367 = vld [vmem:[%s1247 + $0x9a] sm:$0xff]
        %v1368 = vld [vmem:[%s1247 + $0xaa] sm:$0xff]
        %v1369 = vld [vmem:[%s1247 + $0xb2] sm:$0xff]
        %v1370 = vlaneseq
        %v1371 = vshrl.u32 %v1370, 7
        %v1372 = vsub.s32 0, %v1371
        %v1373 = vrot.slane %v1353, %v1372
        %v1374 = vmul.f32 %v1354, %v1373
        %v1375 = vmul.f32 %v1355, %v1373
        %v1376 = vmul.f32 %v1356, %v1373
        %v1377 = vmul.f32 %v1357, %v1373
        %v1378 = vmul.f32 %v1358, %v1373
        %v1379 = vmul.f32 %v1359, %v1373
        %v1380 = vmul.f32 %v1360, %v1373
        %v1381 = vmul.f32 %v1361, %v1373
        %v1382 = vmul.f32 %v1362, %v1373
        %v1383 = vmul.f32 %v1363, %v1373
        %v1384 = vmul.f32 %v1364, %v1373
        %v1385 = vmul.f32 %v1365, %v1373
        %v1386 = vmul.f32 %v1366, %v1373
        %v1387 = vmul.f32 %v1367, %v1373
        %v1388 = vmul.f32 %v1368, %v1373
        %v1389 = vmul.f32 %v1369, %v1373
        %v1390 = vadd.f32 %v1337, %v1374
        %v1391 = vadd.f32 %v1338, %v1375
        %v1392 = vadd.f32 %v1339, %v1376
        %v1393 = vadd.f32 %v1340, %v1377
        %v1394 = vadd.f32 %v1341, %v1378
        %v1395 = vadd.f32 %v1342, %v1379
        %v1396 = vadd.f32 %v1343, %v1380
        %v1397 = vadd.f32 %v1344, %v1381
        %v1398 = vadd.f32 %v1345, %v1382
        %v1399 = vadd.f32 %v1346, %v1383
        %v1400 = vadd.f32 %v1347, %v1384
        %v1401 = vadd.f32 %v1348, %v1385
        %v1402 = vadd.f32 %v1349, %v1386
        %v1403 = vadd.f32 %v1350, %v1387
        %v1404 = vadd.f32 %v1351, %v1388
        %v1405 = vadd.f32 %v1352, %v1389
        %v1406 = vld [vmem:[%s6] sm:$0x1]
        %v1408 = vlaneseq
        %v1409 = vshrl.u32 %v1408, 7
        %v1410 = vsub.s32 0, %v1409
        %v1411 = vrot.slane %v1406, %v1410
        %v1413 = vmul.f32 %v1390, %v1411
        %v1414 = vmul.f32 %v1391, %v1411
        %v1415 = vmul.f32 %v1392, %v1411
        %v1416 = vmul.f32 %v1393, %v1411
        %v1417 = vmul.f32 %v1394, %v1411
        %v1418 = vmul.f32 %v1395, %v1411
        %v1419 = vmul.f32 %v1396, %v1411
        %v1420 = vmul.f32 %v1397, %v1411
        %v1421 = vmul.f32 %v1398, %v1411
        %v1422 = vmul.f32 %v1399, %v1411
        %v1423 = vmul.f32 %v1400, %v1411
        %v1424 = vmul.f32 %v1401, %v1411
        %v1425 = vmul.f32 %v1402, %v1411
        %v1426 = vmul.f32 %v1403, %v1411
        %v1427 = vmul.f32 %v1404, %v1411
        %v1428 = vmul.f32 %v1405, %v1411
        %v1429 = vld [vmem:[%s7] sm:$0x1]
        %v1431 = vlaneseq
        %v1432 = vshrl.u32 %v1431, 7
        %v1433 = vsub.s32 0, %v1432
        %v1434 = vrot.slane %v1429, %v1433
        %v1436 = vadd.f32 %v1413, %v1434
        %v1437 = vadd.f32 %v1414, %v1434
        %v1438 = vadd.f32 %v1415, %v1434
        %v1439 = vadd.f32 %v1416, %v1434
        %v1440 = vadd.f32 %v1417, %v1434
        %v1441 = vadd.f32 %v1418, %v1434
        %v1442 = vadd.f32 %v1419, %v1434
        %v1443 = vadd.f32 %v1420, %v1434
        %v1444 = vadd.f32 %v1421, %v1434
        %v1445 = vadd.f32 %v1422, %v1434
        %v1446 = vadd.f32 %v1423, %v1434
        %v1447 = vadd.f32 %v1424, %v1434
        %v1448 = vadd.f32 %v1425, %v1434
        %v1449 = vadd.f32 %v1426, %v1434
        %v1450 = vadd.f32 %v1427, %v1434
        %v1451 = vadd.f32 %v1428, %v1434
        %vm1452 = vcmp.gt.f32.partialorder %v1436, 0.0
        %vm1453 = vcmp.gt.f32.partialorder %v1437, 0.0
        %vm1454 = vcmp.gt.f32.partialorder %v1438, 0.0
        %vm1455 = vcmp.gt.f32.partialorder %v1439, 0.0
        %vm1456 = vcmp.gt.f32.partialorder %v1440, 0.0
        %vm1457 = vcmp.gt.f32.partialorder %v1441, 0.0
        %vm1458 = vcmp.gt.f32.partialorder %v1442, 0.0
        %vm1459 = vcmp.gt.f32.partialorder %v1443, 0.0
        %vm1460 = vcmp.gt.f32.partialorder %v1444, 0.0
        %vm1461 = vcmp.gt.f32.partialorder %v1445, 0.0
        %vm1462 = vcmp.gt.f32.partialorder %v1446, 0.0
        %vm1463 = vcmp.gt.f32.partialorder %v1447, 0.0
        %vm1464 = vcmp.gt.f32.partialorder %v1448, 0.0
        %vm1465 = vcmp.gt.f32.partialorder %v1449, 0.0
        %vm1466 = vcmp.gt.f32.partialorder %v1450, 0.0
        %vm1467 = vcmp.gt.f32.partialorder %v1451, 0.0
        %v1468 = vld [vmem:[%s8] sm:$0x1]
        %v1470 = vlaneseq
        %v1471 = vshrl.u32 %v1470, 7
        %v1472 = vsub.s32 0, %v1471
        %v1473 = vrot.slane %v1468, %v1472
        %v1475 = vmul.f32 %v1473, %v1436
        %v1476 = vmul.f32 %v1473, %v1437
        %v1477 = vmul.f32 %v1473, %v1438
        %v1478 = vmul.f32 %v1473, %v1439
        %v1479 = vmul.f32 %v1473, %v1440
        %v1480 = vmul.f32 %v1473, %v1441
        %v1481 = vmul.f32 %v1473, %v1442
        %v1482 = vmul.f32 %v1473, %v1443
        %v1483 = vmul.f32 %v1473, %v1444
        %v1484 = vmul.f32 %v1473, %v1445
        %v1485 = vmul.f32 %v1473, %v1446
        %v1486 = vmul.f32 %v1473, %v1447
        %v1487 = vmul.f32 %v1473, %v1448
        %v1488 = vmul.f32 %v1473, %v1449
        %v1489 = vmul.f32 %v1473, %v1450
        %v1490 = vmul.f32 %v1473, %v1451
        %v1491 = vsel %vm1452, %v1436, %v1475
        %v1492 = vsel %vm1453, %v1437, %v1476
        %v1493 = vsel %vm1454, %v1438, %v1477
        %v1494 = vsel %vm1455, %v1439, %v1478
        %v1495 = vsel %vm1456, %v1440, %v1479
        %v1496 = vsel %vm1457, %v1441, %v1480
        %v1497 = vsel %vm1458, %v1442, %v1481
        %v1498 = vsel %vm1459, %v1443, %v1482
        %v1499 = vsel %vm1460, %v1444, %v1483
        %v1500 = vsel %vm1461, %v1445, %v1484
        %v1501 = vsel %vm1462, %v1446, %v1485
        %v1502 = vsel %vm1463, %v1447, %v1486
        %v1503 = vsel %vm1464, %v1448, %v1487
        %v1504 = vsel %vm1465, %v1449, %v1488
        %v1505 = vsel %vm1466, %v1450, %v1489
        %v1506 = vsel %vm1467, %v1451, %v1490
        %v1507 = vpack.c.bf16 %v1492, %v1491
        %v1508 = vpack.c.bf16 %v1494, %v1493
        %v1509 = vpack.c.bf16 %v1496, %v1495
        %v1510 = vpack.c.bf16 %v1498, %v1497
        %v1511 = vpack.c.bf16 %v1500, %v1499
        %v1512 = vpack.c.bf16 %v1502, %v1501
        %v1513 = vpack.c.bf16 %v1504, %v1503
        %v1514 = vpack.c.bf16 %v1506, %v1505
        %v1515 = vld [vmem:[#allocation9] sm:$0xf]
        %v1516 = vld [vmem:[#allocation9 + $0x4] sm:$0xf]
        %v1517 = vld [vmem:[#allocation9 + $0x8] sm:$0xf]
        %v1518 = vld [vmem:[#allocation9 + $0xc] sm:$0xf]
        %v1519 = vld [vmem:[#allocation9 + $0x10] sm:$0xf]
        %v1520 = vld [vmem:[#allocation9 + $0x14] sm:$0xf]
        %v1521 = vld [vmem:[#allocation9 + $0x18] sm:$0xf]
        %v1522 = vld [vmem:[#allocation9 + $0x1c] sm:$0xf]
        %v1523 = vld [vmem:[#allocation9 + $0x20] sm:$0xf]
        %v1524 = vld [vmem:[#allocation9 + $0x24] sm:$0xf]
        %v1525 = vld [vmem:[#allocation9 + $0x28] sm:$0xf]
        %v1526 = vld [vmem:[#allocation9 + $0x2c] sm:$0xf]
        %v1527 = vld [vmem:[#allocation9 + $0x30] sm:$0xf]
        %v1528 = vld [vmem:[#allocation9 + $0x34] sm:$0xf]
        %v1529 = vld [vmem:[#allocation9 + $0x38] sm:$0xf]
        %v1530 = vld [vmem:[#allocation9 + $0x3c] sm:$0xf]
        %v1547 = vunpack.c.l.b16 %v1515
        %v1548 = vunpack.c.l.b16 %v1516
        %v1549 = vunpack.c.l.b16 %v1517
        %v1550 = vunpack.c.l.b16 %v1518
        %v1551 = vunpack.c.l.b16 %v1519
        %v1552 = vunpack.c.l.b16 %v1520
        %v1553 = vunpack.c.l.b16 %v1521
        %v1554 = vunpack.c.l.b16 %v1522
        %v1555 = vunpack.c.l.b16 %v1523
        %v1556 = vunpack.c.l.b16 %v1524
        %v1557 = vunpack.c.l.b16 %v1525
        %v1558 = vunpack.c.l.b16 %v1526
        %v1559 = vunpack.c.l.b16 %v1527
        %v1560 = vunpack.c.l.b16 %v1528
        %v1561 = vunpack.c.l.b16 %v1529
        %v1562 = vunpack.c.l.b16 %v1530
        %v1563 = vpack.c.b16 %v1548, %v1547
        %v1564 = vpack.c.b16 %v1550, %v1549
        %v1565 = vpack.c.b16 %v1552, %v1551
        %v1566 = vpack.c.b16 %v1554, %v1553
        %v1567 = vpack.c.b16 %v1556, %v1555
        %v1568 = vpack.c.b16 %v1558, %v1557
        %v1569 = vpack.c.b16 %v1560, %v1559
        %v1570 = vpack.c.b16 %v1562, %v1561
        %1579 = vmatprep.subr.bf16.mxu0 0
        %1580 = vmatpush1.bf16.msra.mxu0 %v1570
        %1581 = vmatprep.subr.bf16.mxu0 0
        %1582 = vmatpush1.bf16.msra.mxu0 %v1569
        %1583 = vmatprep.subr.bf16.mxu0 0
        %1584 = vmatpush1.bf16.msra.mxu0 %v1568
        %1585 = vmatprep.subr.bf16.mxu0 0
        %1586 = vmatpush1.bf16.msra.mxu0 %v1567
        %1587 = vmatprep.subr.bf16.mxu0 0
        %1588 = vmatpush1.bf16.msra.mxu0 %v1566
        %1589 = vmatprep.subr.bf16.mxu0 0
        %1590 = vmatpush1.bf16.msra.mxu0 %v1565
        %1591 = vmatprep.subr.bf16.mxu0 0
        %1592 = vmatpush1.bf16.msra.mxu0 %v1564
        %1593 = vmatprep.subr.bf16.mxu0 0
        %1594 = vmatpush1.bf16.msra.mxu0 %v1563
        %1595 = vmatprep.subr.bf16.mxu0 0
        %1596 = vmatpush2.bf16.msra.mxu0 0
        %1597 = vmatprep.subr.bf16.mxu0 0
        %1598 = vmatpush2.bf16.msra.mxu0 0
        %1599 = vmatprep.subr.bf16.mxu0 0
        %1600 = vmatpush2.bf16.msra.mxu0 0
        %1601 = vmatprep.subr.bf16.mxu0 0
        %1602 = vmatpush2.bf16.msra.mxu0 0
        %1603 = vmatprep.subr.bf16.mxu0 0
        %1604 = vmatpush2.bf16.msra.mxu0 0
        %1605 = vmatprep.subr.bf16.mxu0 0
        %1606 = vmatpush2.bf16.msra.mxu0 0
        %1607 = vmatprep.subr.bf16.mxu0 0
        %1608 = vmatpush2.bf16.msra.mxu0 0
        %1609 = vmatprep.subr.bf16.mxu0 0
        %1610 = vmatpush2.bf16.msra.mxu0 0
        %1611 = vmatprep.mubr.bf16.mxu0 0
        %1612 = vmatmul.mubr.bf16.gmra.mxu0 %v1507
        %v1613 = vpop.f32.mrf.mxu0
        %v1614 = vadd.f32 0.0, %v1613
        %v1615 = vpop.f32.mrf.mxu0
        %v1616 = vpop.f32.mrf.mxu0
        %v1617 = vadd.f32 0.0, %v1616
        %v1618 = vpop.f32.mrf.mxu0
        %1619 = vmatprep.mubr.bf16.mxu0 0
        %1620 = vmatmul.mubr.bf16.gmra.mxu0 %v1508
        %v1621 = vpop.f32.mrf.mxu0
        %v1622 = vadd.f32 0.0, %v1621
        %v1623 = vpop.f32.mrf.mxu0
        %v1624 = vpop.f32.mrf.mxu0
        %v1625 = vadd.f32 0.0, %v1624
        %v1626 = vpop.f32.mrf.mxu0
        %1627 = vmatprep.mubr.bf16.mxu0 0
        %1628 = vmatmul.mubr.bf16.gmra.mxu0 %v1509
        %v1629 = vpop.f32.mrf.mxu0
        %v1630 = vadd.f32 0.0, %v1629
        %v1631 = vpop.f32.mrf.mxu0
        %v1632 = vpop.f32.mrf.mxu0
        %v1633 = vadd.f32 0.0, %v1632
        %v1634 = vpop.f32.mrf.mxu0
        %1635 = vmatprep.mubr.bf16.mxu0 0
        %1636 = vmatmul.mubr.bf16.gmra.mxu0 %v1510
        %v1637 = vpop.f32.mrf.mxu0
        %v1638 = vadd.f32 0.0, %v1637
        %v1639 = vpop.f32.mrf.mxu0
        %v1640 = vpop.f32.mrf.mxu0
        %v1641 = vadd.f32 0.0, %v1640
        %v1642 = vpop.f32.mrf.mxu0
        %1643 = vmatprep.mubr.bf16.mxu0 0
        %1644 = vmatmul.mubr.bf16.gmra.mxu0 %v1511
        %v1645 = vpop.f32.mrf.mxu0
        %v1646 = vadd.f32 0.0, %v1645
        %v1647 = vpop.f32.mrf.mxu0
        %v1648 = vpop.f32.mrf.mxu0
        %v1649 = vadd.f32 0.0, %v1648
        %v1650 = vpop.f32.mrf.mxu0
        %1651 = vmatprep.mubr.bf16.mxu0 0
        %1652 = vmatmul.mubr.bf16.gmra.mxu0 %v1512
        %v1653 = vpop.f32.mrf.mxu0
        %v1654 = vadd.f32 0.0, %v1653
        %v1655 = vpop.f32.mrf.mxu0
        %v1656 = vpop.f32.mrf.mxu0
        %v1657 = vadd.f32 0.0, %v1656
        %v1658 = vpop.f32.mrf.mxu0
        %1659 = vmatprep.mubr.bf16.mxu0 0
        %1660 = vmatmul.mubr.bf16.gmra.mxu0 %v1513
        %v1661 = vpop.f32.mrf.mxu0
        %v1662 = vadd.f32 0.0, %v1661
        %v1663 = vpop.f32.mrf.mxu0
        %v1664 = vpop.f32.mrf.mxu0
        %v1665 = vadd.f32 0.0, %v1664
        %v1666 = vpop.f32.mrf.mxu0
        %1667 = vmatprep.mubr.bf16.mxu0 0
        %1668 = vmatmul.mubr.bf16.gmra.mxu0 %v1514
        %v1669 = vpop.f32.mrf.mxu0
        %v1670 = vadd.f32 0.0, %v1669
        %v1671 = vpop.f32.mrf.mxu0
        %v1672 = vpop.f32.mrf.mxu0
        %v1673 = vadd.f32 0.0, %v1672
        %v1674 = vpop.f32.mrf.mxu0
        %1675 = vdwg.mxu0
        %v1676 = vld [vmem:[%s10] sm:$0x1]
        %v1678 = vlaneseq
        %v1679 = vshrl.u32 %v1678, 7
        %v1680 = vsub.s32 0, %v1679
        %v1681 = vrot.slane %v1676, %v1680
        %v1683 = vmul.f32 %v1614, %v1681
        %v1684 = vmul.f32 %v1617, %v1681
        %v1685 = vmul.f32 %v1622, %v1681
        %v1686 = vmul.f32 %v1625, %v1681
        %v1687 = vmul.f32 %v1630, %v1681
        %v1688 = vmul.f32 %v1633, %v1681
        %v1689 = vmul.f32 %v1638, %v1681
        %v1690 = vmul.f32 %v1641, %v1681
        %v1691 = vmul.f32 %v1646, %v1681
        %v1692 = vmul.f32 %v1649, %v1681
        %v1693 = vmul.f32 %v1654, %v1681
        %v1694 = vmul.f32 %v1657, %v1681
        %v1695 = vmul.f32 %v1662, %v1681
        %v1696 = vmul.f32 %v1665, %v1681
        %v1697 = vmul.f32 %v1670, %v1681
        %v1698 = vmul.f32 %v1673, %v1681
        %v1699 = vld [vmem:[%s11] sm:$0x1]
        %v1701 = vlaneseq
        %v1702 = vshrl.u32 %v1701, 7
        %v1703 = vsub.s32 0, %v1702
        %v1704 = vrot.slane %v1699, %v1703
        %v1706 = vadd.f32 %v1683, %v1704
        %v1707 = vadd.f32 %v1684, %v1704
        %v1708 = vadd.f32 %v1685, %v1704
        %v1709 = vadd.f32 %v1686, %v1704
        %v1710 = vadd.f32 %v1687, %v1704
        %v1711 = vadd.f32 %v1688, %v1704
        %v1712 = vadd.f32 %v1689, %v1704
        %v1713 = vadd.f32 %v1690, %v1704
        %v1714 = vadd.f32 %v1691, %v1704
        %v1715 = vadd.f32 %v1692, %v1704
        %v1716 = vadd.f32 %v1693, %v1704
        %v1717 = vadd.f32 %v1694, %v1704
        %v1718 = vadd.f32 %v1695, %v1704
        %v1719 = vadd.f32 %v1696, %v1704
        %v1720 = vadd.f32 %v1697, %v1704
        %v1721 = vadd.f32 %v1698, %v1704
        %v1722 = vunpack.c.l.bf16 %v498
        %v1723 = vunpack.c.l.bf16 %v499
        %v1724 = vunpack.c.l.bf16 %v500
        %v1725 = vunpack.c.l.bf16 %v501
        %v1726 = vunpack.c.l.bf16 %v502
        %v1727 = vunpack.c.l.bf16 %v503
        %v1728 = vunpack.c.l.bf16 %v504
        %v1729 = vunpack.c.l.bf16 %v505
        %v1730 = vunpack.c.l.bf16 %v506
        %v1731 = vunpack.c.l.bf16 %v507
        %v1732 = vunpack.c.l.bf16 %v508
        %v1733 = vunpack.c.l.bf16 %v509
        %v1734 = vunpack.c.l.bf16 %v510
        %v1735 = vunpack.c.l.bf16 %v511
        %v1736 = vunpack.c.l.bf16 %v512
        %v1737 = vunpack.c.l.bf16 %v513
        %v1738 = vadd.f32 %v1706, %v1722
        %v1739 = vadd.f32 %v1707, %v1723
        %v1740 = vadd.f32 %v1708, %v1724
        %v1741 = vadd.f32 %v1709, %v1725
        %v1742 = vadd.f32 %v1710, %v1726
        %v1743 = vadd.f32 %v1711, %v1727
        %v1744 = vadd.f32 %v1712, %v1728
        %v1745 = vadd.f32 %v1713, %v1729
        %v1746 = vadd.f32 %v1714, %v1730
        %v1747 = vadd.f32 %v1715, %v1731
        %v1748 = vadd.f32 %v1716, %v1732
        %v1749 = vadd.f32 %v1717, %v1733
        %v1750 = vadd.f32 %v1718, %v1734
        %v1751 = vadd.f32 %v1719, %v1735
        %v1752 = vadd.f32 %v1720, %v1736
        %v1753 = vadd.f32 %v1721, %v1737
        %1754 = vst [vmem:[%s489] sm:$0xff] %v1738
        %1755 = vst [vmem:[%s489 + $0x8] sm:$0xff] %v1739
        %1756 = vst [vmem:[%s489 + $0x10] sm:$0xff] %v1740
        %1757 = vst [vmem:[%s489 + $0x18] sm:$0xff] %v1741
        %1758 = vst [vmem:[%s489 + $0x20] sm:$0xff] %v1742
        %1759 = vst [vmem:[%s489 + $0x28] sm:$0xff] %v1743
        %1760 = vst [vmem:[%s489 + $0x30] sm:$0xff] %v1744
        %1761 = vst [vmem:[%s489 + $0x38] sm:$0xff] %v1745
        %1762 = vst [vmem:[%s489 + $0x40] sm:$0xff] %v1746
        %1763 = vst [vmem:[%s489 + $0x48] sm:$0xff] %v1747
        %1764 = vst [vmem:[%s489 + $0x50] sm:$0xff] %v1748
        %1765 = vst [vmem:[%s489 + $0x58] sm:$0xff] %v1749
        %1766 = vst [vmem:[%s489 + $0x60] sm:$0xff] %v1750
        %1767 = vst [vmem:[%s489 + $0x68] sm:$0xff] %v1751
        %1768 = vst [vmem:[%s489 + $0x70] sm:$0xff] %v1752
        %1769 = vst [vmem:[%s489 + $0x78] sm:$0xff] %v1753
        %s1770 = sand.u32 %s310, 1
        %s1771 = scalar_lea.sflag [#allocation5], %s1770
        %s1772 = sand.u32 %s310, 1
        %s1773 = smul.addr %s1772, 128
        %s1774 = scalar_lea.vmem [#allocation11], %s1773
        // Predicated region
        $region93: #{tpu_custom_call.1} parent=67 // pred_check
          %p1775 = pneg %p320
        $region94: #{tpu_custom_call.1} parent=67 // pred_check_branch
          %1777 = sbr.rel (%p1775) target = $region96
        $region95: #{tpu_custom_call.1} parent=67 // pred_region
          %s1778 = smul.u32 8, %s36
          %s1780 = ssub.s32 2048, 2048
          %1781 = vsyncadd %s1771, %s1780
          %s1782 = smul.addr %s1778, 2
          %s1783 = smul.addr %s35, 32
          %s1784 = sadd.s32 %s1782, %s1783
          %s1785 = smul.addr %s1784, 128
          %s1786 = scalar_lea.hbm %s12, %s1785
          %s1787 = sshll.u32 %s1774, 4
          %s1788 = int_to_ptr.vmem [resolvable:$true] %s1787
          %1793 = dma.vmem_to_hbm [thread:$0]  %s1788, 2048, %s1786, %s1771, 128, 128, 8
        $region96: #{tpu_custom_call.1} parent=67 // pred_fallthru
          _
      $region68: #{tpu_custom_call.1} parent=5 // pred_fallthru
        _
      %p1794 = scmp.le.s32.totalorder 2, %s26
      // Predicated region
      $region97: #{tpu_custom_call.1} parent=5 // pred_check
        %p1795 = pneg %p1794
      $region98: #{tpu_custom_call.1} parent=5 // pred_check_branch
        %1797 = sbr.rel (%p1795) target = $region100
      $region99: #{tpu_custom_call.1} parent=5 // pred_region
        %s1798 = ssub.s32 %s26, 2
        // Predicated region
        $region101: #{tpu_custom_call.1} parent=99 // pred_check
          %p1799 = pneg %p326
        $region102: #{tpu_custom_call.1} parent=99 // pred_check_branch
          %1801 = sbr.rel (%p1799) target = $region104
        $region103: #{tpu_custom_call.1} parent=99 // pred_region
          %s1802 = sand.u32 %s311, 1
          %s1803 = scalar_lea.sflag [#allocation5], %s1802
          %s1804 = sand.u32 %s311, 1
          %s1805 = smul.addr %s1804, 128
          %s1806 = scalar_lea.vmem [#allocation11], %s1805
          %1807 = dma.done %s1803, 2048
        $region104: #{tpu_custom_call.1} parent=99 // pred_fallthru
          _
      $region100: #{tpu_custom_call.1} parent=5 // pred_fallthru
        _
    $region6: #{tpu_custom_call.1} parent=1 // loop_footer
      %s30 = sadd.s32 1, %s26
    $region7: #{tpu_custom_call.1} parent=1 // loop_footer_branch
      %25 = sbr.rel target = $region3
    $region8: #{tpu_custom_call.1} parent=1 // loop_exit
      _
    %1808 = vsyncpa [#allocation4], 1
    %s1809 = scalar_lea.sflag [#allocation4], 1
    %1810 = vsyncpa %s1809, 1
    %1811 = vsyncpa [#allocation7], 1
    %1812 = vsyncpa [#allocation10], 1
    %1813 = vsyncpa [#allocation5], 1
    %s1814 = scalar_lea.sflag [#allocation5], 1
    %1815 = vsyncpa %s1814, 1

</llo_original>
